<compile_context>
chip_gen: v7x
topology: tpu7x:2x2x1
jax: 0.10.0
libtpu: 0.0.40
codegen_flags: <defaults>
</compile_context>

<pallas_src>
import jax
import jax.numpy as jnp
from jax import lax
from jax.experimental import pallas as pl

# ---------------- model config (small, consistent with a BERT MLM) ----------
B, S = 2, 8            # batch, sequence
H = 32                 # hidden size
N_HEADS = 2
D_HEAD = H // N_HEADS
FFN = 4 * H            # 128
V = 128                # vocab size (lane-aligned)
N_LAYERS = 2
MAX_POS = 16
LN_EPS = 1e-12         # HF BERT layernorm eps
M = B * S              # tokens


def _gelu(x):
    # TODO(synk): HF BERT/Geneformer uses the exact erf-GELU; the tanh
    # approximation is used here for guaranteed Mosaic lowering.
    return jax.nn.gelu(x, approximate=True)


def _layernorm(x, g, b):
    mean = jnp.mean(x, axis=-1, keepdims=True)
    xc = x - mean
    var = jnp.mean(xc * xc, axis=-1, keepdims=True)
    return xc * lax.rsqrt(var + LN_EPS) * g + b


# ---------------- single fused Pallas kernel ---------------------------------
def _fused_forward_kernel(
    ids_ref,        # [M, 1]        int32 token ids
    pos_type_ref,   # [M, H]        precomputed position + token-type embeddings
    wqkv_ref,       # [L, H, 3H]    fused QKV weights (Q columns pre-scaled)
    wo_mlm_ref,     # [L+1, H, H]   per-layer attn-out weights | MLM dense weight
    w1_dec_ref,     # [L+1, H, 128] per-layer FFN-in weights   | tied decoder (word_emb^T)
    w2_emb_ref,     # [L+1, 128, H] per-layer FFN-out weights  | word embeddings
    vecs_ref,       # [L+1, 8, 128] packed biases / LN params / masked decoder bias
    o_ref,          # [M, V]        logits out
):
    f32 = jnp.float32
    word_emb = w2_emb_ref[N_LAYERS]        # [V, H]
    word_emb_t = w1_dec_ref[N_LAYERS]      # [H, V]  (pre-transposed at init)
    mlm_w = wo_mlm_ref[N_LAYERS]           # [H, H]
    hv = vecs_ref[N_LAYERS]                # [8, 128] head/embedding small params

    # ---- embedding lookup fused in-kernel: one-hot [M,V] @ word_emb [V,H]
    # on the MXU (replaces host-side jnp.take + adds + an HBM round trip).
    ids = ids_ref[...]                                            # [M, 1]
    vocab_iota = lax.broadcasted_iota(jnp.int32, (M, V), 1)
    onehot = jnp.where(vocab_iota == ids, f32(1.0), f32(0.0))     # [M, V]
    x = jnp.dot(onehot, word_emb, preferred_element_type=f32) + pos_type_ref[...]
    x = _layernorm(x, hv[0:1, 0:H], hv[1:2, 0:H])

    # ---- block-diagonal additive bias so full-M attention never mixes
    # different batch elements (computed once, reused by every head/layer).
    r = lax.broadcasted_iota(jnp.int32, (M, M), 0)
    c = lax.broadcasted_iota(jnp.int32, (M, M), 1)
    same_seq = r < 0                                              # all-False [M, M]
    for b in range(B):
        lo, hi = b * S, (b + 1) * S
        same_seq = same_seq | ((r >= lo) & (r < hi) & (c >= lo) & (c < hi))
    attn_bias = jnp.where(same_seq, f32(0.0), f32(-1e30))

    # ---- transformer layers (tiny L -> static unroll, all VMEM-resident). ---
    # TODO(synk): attention_mask / padding of the HF forward is not modeled.
    for l in range(N_LAYERS):
        lv = vecs_ref[l]                                          # [8, 128]
        wo_l = wo_mlm_ref[l]                                      # [H, H]

        # Fused QKV projection: one [M, 3H] matmul; 1/sqrt(dH) folded into Q.
        qkv = jnp.dot(x, wqkv_ref[l], preferred_element_type=f32) + lv[0:1, 0:3 * H]

        # Per-head full-M attention; each head output is folded directly into
        # the output projection (attn += (p @ v_h) @ wo[h_rows]) -> no concats.
        attn = lv[1:2, 0:H]                                       # attn-out bias
        for h in range(N_HEADS):
            c0 = h * D_HEAD
            q_h = qkv[:, c0:c0 + D_HEAD]                          # [M, dH]
            k_h = qkv[:, H + c0:H + c0 + D_HEAD]
            v_h = qkv[:, 2 * H + c0:2 * H + c0 + D_HEAD]
            # q @ k^T (contract dim 1 of both), then batch-isolation bias.
            s = lax.dot_general(q_h, k_h, (((1,), (1,)), ((), ())),
                                preferred_element_type=f32) + attn_bias
            s = s - jnp.max(s, axis=-1, keepdims=True)
            p = jnp.exp(s)
            p = p * pl.reciprocal(jnp.sum(p, axis=-1, keepdims=True), approx=True)
            h_out = jnp.dot(p, v_h, preferred_element_type=f32)   # [M, dH]
            attn = attn + jnp.dot(h_out, wo_l[c0:c0 + D_HEAD, :],
                                  preferred_element_type=f32)     # [M, H]

        x = _layernorm(x + attn, lv[2:3, 0:H], lv[3:4, 0:H])

        ff = _gelu(jnp.dot(x, w1_dec_ref[l], preferred_element_type=f32)
                   + lv[4:5, 0:FFN])
        ff = jnp.dot(ff, w2_emb_ref[l], preferred_element_type=f32) + lv[5:6, 0:H]
        x = _layernorm(x + ff, lv[6:7, 0:H], lv[7:8, 0:H])

    # ---- MLM head: dense + gelu + LN + tied decoder (pre-transposed) + bias.
    hh = _gelu(jnp.dot(x, mlm_w, preferred_element_type=f32) + hv[2:3, 0:H])
    hh = _layernorm(hh, hv[3:4, 0:H], hv[4:5, 0:H])

    # Decoder bias already carries -inf at missing_nv_tokens (adapter masking),
    # so a single add replaces the compare + select.
    logits = jnp.dot(hh, word_emb_t, preferred_element_type=f32) + hv[5:6, 0:V]
    o_ref[...] = logits.astype(o_ref.dtype)     # lane-dense [M, V=128] store


# ---------------- deterministic synthetic parameters (packed) ----------------
def init_params(key, missing_ids):
    """Synthetic BERT-MLM weights packed into 6 f32 operands for the kernel."""
    keys = iter(jax.random.split(key, 64))

    def nrm(shape):
        return jax.random.normal(next(keys), shape, jnp.float32) * 0.02

    word_emb = nrm((V, H))
    pos_emb = nrm((MAX_POS, H))
    type_emb = nrm((2, H))

    scale = 1.0 / (D_HEAD ** 0.5)
    ones_h = jnp.ones((H,), jnp.float32)

    wqkv, wo, w1, w2, layer_vecs = [], [], [], [], []
    for _ in range(N_LAYERS):
        wq, wk, wv = nrm((H, H)), nrm((H, H)), nrm((H, H))
        # Fold the attention scale 1/sqrt(dH) into the Q projection (w + b).
        wqkv.append(jnp.concatenate([wq * scale, wk, wv], axis=1))      # [H, 3H]
        wo.append(nrm((H, H)))
        w1.append(nrm((H, FFN)))
        w2.append(nrm((FFN, H)))

        bqkv = jnp.zeros((3 * H,), jnp.float32).at[0:H].multiply(scale)
        slab = jnp.zeros((8, 128), jnp.float32)
        slab = slab.at[0, 0:3 * H].set(bqkv)      # row 0: fused QKV bias
        #        row 1: attn output bias (zeros)
        slab = slab.at[2, 0:H].set(ones_h)        # row 2: ln1 gamma
        #        row 3: ln1 beta (zeros)
        #        row 4: FFN bias 1 (zeros)
        #        row 5: FFN bias 2 (zeros)
        slab = slab.at[6, 0:H].set(ones_h)        # row 6: ln2 gamma
        #        row 7: ln2 beta (zeros)
        layer_vecs.append(slab)

    mlm_dense_w = nrm((H, H))

    # Decoder bias with the GeneformerHFAdapter vocab masking folded in:
    # logits[:, :, missing_nv_tokens] = -inf  ==  add -inf at those columns.
    dec_bias = jnp.zeros((V,), jnp.float32).at[missing_ids].set(-jnp.inf)

    head = jnp.zeros((8, 128), jnp.float32)
    head = head.at[0, 0:H].set(ones_h)            # row 0: embedding LN gamma
    #      row 1: embedding LN beta (zeros)
    #      row 2: MLM dense bias (zeros)
    head = head.at[3, 0:H].set(ones_h)            # row 3: MLM LN gamma
    #      row 4: MLM LN beta (zeros)
    head = head.at[5, 0:V].set(dec_bias)          # row 5: tied-decoder bias + mask

    # Position + token-type embeddings are input-independent at fixed (B, S):
    # precompute the additive [M, H] term once (token_type_ids == 0).
    pos_type = jnp.tile(pos_emb[:S], (B, 1)) + type_emb[0][None, :]

    return {
        "pos_type_emb": pos_type,                       # [M, H]
        "wqkv": jnp.stack(wqkv),                        # [L, H, 3H]
        "wo_mlm": jnp.stack(wo + [mlm_dense_w]),        # [L+1, H, H]
        "w1_dec": jnp.stack(w1 + [word_emb.T]),         # [L+1, H, 128]
        "w2_emb": jnp.stack(w2 + [word_emb]),           # [L+1, 128, H]
        "vecs": jnp.stack(layer_vecs + [head]),         # [L+1, 8, 128]
    }


# ---------------- forward (== GeneformerHFAdapter.forward semantics) --------
@jax.jit
def geneformer_adapter_forward(params, input_ids):
    """logits = BERT-MLM(input_ids); logits at missing_nv_tokens are -inf."""
    Bx, Sx = input_ids.shape
    ids = input_ids.reshape(Bx * Sx, 1).astype(jnp.int32)
    # Whole embeddings + encoder + MLM head + vocab masking in ONE pallas_call
    # (no grid: every operand is a single full-array block resident in VMEM).
    logits = pl.pallas_call(
        _fused_forward_kernel,
        out_shape=jax.ShapeDtypeStruct((Bx * Sx, V), jnp.float32),
    )(
        ids,
        params["pos_type_emb"],
        params["wqkv"],
        params["wo_mlm"],
        params["w1_dec"],
        params["w2_emb"],
        params["vecs"],
    )
    return logits.reshape(Bx, Sx, V)


if __name__ == "__main__":
    key = jax.random.PRNGKey(0)
    pkey, ikey = jax.random.split(key)

    # Deterministic synthetic `missing_nv_tokens` (vocab ids absent from the NV
    # tokenizer); fixed at construction time, like the registered buffer.
    missing_ids = jnp.arange(5, V, 9, dtype=jnp.int32)
    params = init_params(pkey, missing_ids)

    input_ids = jax.random.randint(ikey, (B, S), 0, V, dtype=jnp.int32)

    logits = jax.block_until_ready(geneformer_adapter_forward(params, input_ids))

    assert logits.shape == (B, S, V)
    assert bool(jnp.all(logits[:, :, missing_ids] == -jnp.inf))
    assert bool(jnp.all(jnp.isfinite(
        jnp.delete(logits, missing_ids, axis=-1, assume_unique_indices=True))))
    print("KERNEL_OK")
</pallas_src>

<mosaic_0001>
module attributes {stable_mosaic.version = 11 : i64} {
  func.func @_fused_forward_kernel(%arg0: memref<16x1xi32, #tpu.memory_space<vmem>>, %arg1: memref<16x32xf32, #tpu.memory_space<vmem>>, %arg2: memref<2x32x96xf32, #tpu.memory_space<vmem>>, %arg3: memref<3x32x32xf32, #tpu.memory_space<vmem>>, %arg4: memref<3x32x128xf32, #tpu.memory_space<vmem>>, %arg5: memref<3x128x32xf32, #tpu.memory_space<vmem>>, %arg6: memref<3x8x128xf32, #tpu.memory_space<vmem>>, %arg7: memref<16x128xf32, #tpu.memory_space<vmem>>) attributes {dimension_semantics = [], scalar_prefetch = 0 : i64, scratch_operands = 0 : i64, tpu.core_type = #tpu.core_type<tc>} {
    %c2 = arith.constant 2 : index
    %c0 = arith.constant 0 : index
    %c0_0 = arith.constant 0 : index
    %0 = vector.load %arg5[%c2, %c0, %c0_0] : memref<3x128x32xf32, #tpu.memory_space<vmem>>, vector<1x128x32xf32>
    %1 = vector.shape_cast %0 : vector<1x128x32xf32> to vector<128x32xf32>
    %c2_1 = arith.constant 2 : index
    %c0_2 = arith.constant 0 : index
    %c0_3 = arith.constant 0 : index
    %2 = vector.load %arg4[%c2_1, %c0_2, %c0_3] : memref<3x32x128xf32, #tpu.memory_space<vmem>>, vector<1x32x128xf32>
    %3 = vector.shape_cast %2 : vector<1x32x128xf32> to vector<32x128xf32>
    %c2_4 = arith.constant 2 : index
    %c0_5 = arith.constant 0 : index
    %c0_6 = arith.constant 0 : index
    %4 = vector.load %arg3[%c2_4, %c0_5, %c0_6] : memref<3x32x32xf32, #tpu.memory_space<vmem>>, vector<1x32x32xf32>
    %5 = vector.shape_cast %4 : vector<1x32x32xf32> to vector<32x32xf32>
    %c2_7 = arith.constant 2 : index
    %c0_8 = arith.constant 0 : index
    %c0_9 = arith.constant 0 : index
    %6 = vector.load %arg6[%c2_7, %c0_8, %c0_9] : memref<3x8x128xf32, #tpu.memory_space<vmem>>, vector<1x8x128xf32>
    %7 = vector.shape_cast %6 : vector<1x8x128xf32> to vector<8x128xf32>
    %c0_10 = arith.constant 0 : index
    %c0_11 = arith.constant 0 : index
    %8 = vector.load %arg0[%c0_10, %c0_11] : memref<16x1xi32, #tpu.memory_space<vmem>>, vector<16x1xi32>
    %9 = tpu.iota {dimensions = array<i32: 1>} : vector<16x128xi32>
    %10 = vector.broadcast %8 : vector<16x1xi32> to vector<16x128xi32>
    %11 = arith.cmpi eq, %9, %10 : vector<16x128xi32>
    %cst = arith.constant 1.000000e+00 : f32
    %cst_12 = arith.constant 0.000000e+00 : f32
    %12 = vector.broadcast %cst : f32 to vector<16x128xf32>
    %13 = vector.broadcast %cst_12 : f32 to vector<16x128xf32>
    %14 = arith.select %11, %12, %13 : vector<16x128xi1>, vector<16x128xf32>
    %cst_13 = arith.constant dense<0.000000e+00> : vector<16x32xf32>
    %15 = tpu.matmul %14, %1, %cst_13 {dimension_numbers = #tpu.dot_dimension_numbers<[1], [0], [0], [1], [0, 0, 1, 1], [], []>} : vector<16x128xf32>, vector<128x32xf32>, vector<16x32xf32> -> vector<16x32xf32>
    %c0_14 = arith.constant 0 : index
    %c0_15 = arith.constant 0 : index
    %16 = vector.load %arg1[%c0_14, %c0_15] : memref<16x32xf32, #tpu.memory_space<vmem>>, vector<16x32xf32>
    %17 = arith.addf %15, %16 : vector<16x32xf32>
    %18 = vector.extract_strided_slice %7 {offsets = [0, 0], sizes = [1, 32], strides = [1, 1]} : vector<8x128xf32> to vector<1x32xf32>
    %19 = vector.extract_strided_slice %7 {offsets = [1, 0], sizes = [1, 32], strides = [1, 1]} : vector<8x128xf32> to vector<1x32xf32>
    %cst_16 = arith.constant dense<0.000000e+00> : vector<16xf32>
    %20 = vector.multi_reduction <add>, %17, %cst_16 [1] : vector<16x32xf32> to vector<16xf32>
    %21 = vector.shape_cast %20 : vector<16xf32> to vector<16x1xf32>
    %cst_17 = arith.constant 3.200000e+01 : f32
    %22 = vector.broadcast %cst_17 : f32 to vector<16x1xf32>
    %23 = arith.divf %21, %22 : vector<16x1xf32>
    %24 = vector.broadcast %23 : vector<16x1xf32> to vector<16x32xf32>
    %25 = arith.subf %17, %24 : vector<16x32xf32>
    %26 = arith.mulf %25, %25 : vector<16x32xf32>
    %cst_18 = arith.constant dense<0.000000e+00> : vector<16xf32>
    %27 = vector.multi_reduction <add>, %26, %cst_18 [1] : vector<16x32xf32> to vector<16xf32>
    %28 = vector.shape_cast %27 : vector<16xf32> to vector<16x1xf32>
    %cst_19 = arith.constant 3.200000e+01 : f32
    %29 = vector.broadcast %cst_19 : f32 to vector<16x1xf32>
    %30 = arith.divf %28, %29 : vector<16x1xf32>
    %cst_20 = arith.constant 9.99999996E-13 : f32
    %31 = vector.broadcast %cst_20 : f32 to vector<16x1xf32>
    %32 = arith.addf %30, %31 : vector<16x1xf32>
    %33 = math.rsqrt %32 : vector<16x1xf32>
    %34 = vector.broadcast %33 : vector<16x1xf32> to vector<16x32xf32>
    %35 = arith.mulf %25, %34 : vector<16x32xf32>
    %36 = vector.broadcast %18 : vector<1x32xf32> to vector<16x32xf32>
    %37 = arith.mulf %35, %36 : vector<16x32xf32>
    %38 = vector.broadcast %19 : vector<1x32xf32> to vector<16x32xf32>
    %39 = arith.addf %37, %38 : vector<16x32xf32>
    %40 = tpu.iota {dimensions = array<i32: 0>} : vector<16x16xi32>
    %41 = tpu.iota {dimensions = array<i32: 1>} : vector<16x16xi32>
    %c0_i32 = arith.constant 0 : i32
    %42 = vector.broadcast %c0_i32 : i32 to vector<16x16xi32>
    %43 = arith.cmpi slt, %40, %42 : vector<16x16xi32>
    %c0_i32_21 = arith.constant 0 : i32
    %44 = vector.broadcast %c0_i32_21 : i32 to vector<16x16xi32>
    %45 = arith.cmpi sge, %40, %44 : vector<16x16xi32>
    %c8_i32 = arith.constant 8 : i32
    %46 = vector.broadcast %c8_i32 : i32 to vector<16x16xi32>
    %47 = arith.cmpi slt, %40, %46 : vector<16x16xi32>
    %48 = arith.andi %45, %47 : vector<16x16xi1>
    %c0_i32_22 = arith.constant 0 : i32
    %49 = vector.broadcast %c0_i32_22 : i32 to vector<16x16xi32>
    %50 = arith.cmpi sge, %41, %49 : vector<16x16xi32>
    %51 = arith.andi %48, %50 : vector<16x16xi1>
    %c8_i32_23 = arith.constant 8 : i32
    %52 = vector.broadcast %c8_i32_23 : i32 to vector<16x16xi32>
    %53 = arith.cmpi slt, %41, %52 : vector<16x16xi32>
    %54 = arith.andi %51, %53 : vector<16x16xi1>
    %55 = arith.ori %43, %54 : vector<16x16xi1>
    %c8_i32_24 = arith.constant 8 : i32
    %56 = vector.broadcast %c8_i32_24 : i32 to vector<16x16xi32>
    %57 = arith.cmpi sge, %40, %56 : vector<16x16xi32>
    %c16_i32 = arith.constant 16 : i32
    %58 = vector.broadcast %c16_i32 : i32 to vector<16x16xi32>
    %59 = arith.cmpi slt, %40, %58 : vector<16x16xi32>
    %60 = arith.andi %57, %59 : vector<16x16xi1>
    %c8_i32_25 = arith.constant 8 : i32
    %61 = vector.broadcast %c8_i32_25 : i32 to vector<16x16xi32>
    %62 = arith.cmpi sge, %41, %61 : vector<16x16xi32>
    %63 = arith.andi %60, %62 : vector<16x16xi1>
    %c16_i32_26 = arith.constant 16 : i32
    %64 = vector.broadcast %c16_i32_26 : i32 to vector<16x16xi32>
    %65 = arith.cmpi slt, %41, %64 : vector<16x16xi32>
    %66 = arith.andi %63, %65 : vector<16x16xi1>
    %67 = arith.ori %55, %66 : vector<16x16xi1>
    %cst_27 = arith.constant 0.000000e+00 : f32
    %cst_28 = arith.constant -1.000000e+30 : f32
    %68 = vector.broadcast %cst_27 : f32 to vector<16x16xf32>
    %69 = vector.broadcast %cst_28 : f32 to vector<16x16xf32>
    %70 = arith.select %67, %68, %69 : vector<16x16xi1>, vector<16x16xf32>
    %c0_29 = arith.constant 0 : index
    %c0_30 = arith.constant 0 : index
    %c0_31 = arith.constant 0 : index
    %71 = vector.load %arg6[%c0_29, %c0_30, %c0_31] : memref<3x8x128xf32, #tpu.memory_space<vmem>>, vector<1x8x128xf32>
    %72 = vector.shape_cast %71 : vector<1x8x128xf32> to vector<8x128xf32>
    %c0_32 = arith.constant 0 : index
    %c0_33 = arith.constant 0 : index
    %c0_34 = arith.constant 0 : index
    %73 = vector.load %arg3[%c0_32, %c0_33, %c0_34] : memref<3x32x32xf32, #tpu.memory_space<vmem>>, vector<1x32x32xf32>
    %74 = vector.shape_cast %73 : vector<1x32x32xf32> to vector<32x32xf32>
    %c0_35 = arith.constant 0 : index
    %c0_36 = arith.constant 0 : index
    %c0_37 = arith.constant 0 : index
    %75 = vector.load %arg2[%c0_35, %c0_36, %c0_37] : memref<2x32x96xf32, #tpu.memory_space<vmem>>, vector<1x32x96xf32>
    %76 = vector.shape_cast %75 : vector<1x32x96xf32> to vector<32x96xf32>
    %cst_38 = arith.constant dense<0.000000e+00> : vector<16x96xf32>
    %77 = tpu.matmul %39, %76, %cst_38 {dimension_numbers = #tpu.dot_dimension_numbers<[1], [0], [0], [1], [0, 0, 1, 1], [], []>} : vector<16x32xf32>, vector<32x96xf32>, vector<16x96xf32> -> vector<16x96xf32>
    %78 = vector.extract_strided_slice %72 {offsets = [0, 0], sizes = [1, 96], strides = [1, 1]} : vector<8x128xf32> to vector<1x96xf32>
    %79 = vector.broadcast %78 : vector<1x96xf32> to vector<16x96xf32>
    %80 = arith.addf %77, %79 : vector<16x96xf32>
    %81 = vector.extract_strided_slice %72 {offsets = [1, 0], sizes = [1, 32], strides = [1, 1]} : vector<8x128xf32> to vector<1x32xf32>
    %82 = vector.extract_strided_slice %80 {offsets = [0, 0], sizes = [16, 16], strides = [1, 1]} : vector<16x96xf32> to vector<16x16xf32>
    %83 = vector.extract_strided_slice %80 {offsets = [0, 32], sizes = [16, 16], strides = [1, 1]} : vector<16x96xf32> to vector<16x16xf32>
    %84 = vector.extract_strided_slice %80 {offsets = [0, 64], sizes = [16, 16], strides = [1, 1]} : vector<16x96xf32> to vector<16x16xf32>
    %cst_39 = arith.constant dense<0.000000e+00> : vector<16x16xf32>
    %85 = tpu.matmul %82, %83, %cst_39 {dimension_numbers = #tpu.dot_dimension_numbers<[1], [1], [0], [0], [0, 0, 1, 0], [], []>} : vector<16x16xf32>, vector<16x16xf32>, vector<16x16xf32> -> vector<16x16xf32>
    %86 = arith.addf %85, %70 : vector<16x16xf32>
    %cst_40 = arith.constant dense<0xFF800000> : vector<16xf32>
    %87 = vector.multi_reduction <maximumf>, %86, %cst_40 [1] : vector<16x16xf32> to vector<16xf32>
    %88 = vector.shape_cast %87 : vector<16xf32> to vector<16x1xf32>
    %89 = vector.broadcast %88 : vector<16x1xf32> to vector<16x16xf32>
    %90 = arith.subf %86, %89 : vector<16x16xf32>
    %91 = math.exp %90 : vector<16x16xf32>
    %cst_41 = arith.constant dense<0.000000e+00> : vector<16xf32>
    %92 = vector.multi_reduction <add>, %91, %cst_41 [1] : vector<16x16xf32> to vector<16xf32>
    %93 = vector.shape_cast %92 : vector<16xf32> to vector<16x1xf32>
    %94 = tpu.reciprocal %93 {approx = true} : vector<16x1xf32> -> vector<16x1xf32>
    %95 = vector.broadcast %94 : vector<16x1xf32> to vector<16x16xf32>
    %96 = arith.mulf %91, %95 : vector<16x16xf32>
    %cst_42 = arith.constant dense<0.000000e+00> : vector<16x16xf32>
    %97 = tpu.matmul %96, %84, %cst_42 {dimension_numbers = #tpu.dot_dimension_numbers<[1], [0], [0], [1], [0, 0, 1, 1], [], []>} : vector<16x16xf32>, vector<16x16xf32>, vector<16x16xf32> -> vector<16x16xf32>
    %98 = vector.extract_strided_slice %74 {offsets = [0, 0], sizes = [16, 32], strides = [1, 1]} : vector<32x32xf32> to vector<16x32xf32>
    %cst_43 = arith.constant dense<0.000000e+00> : vector<16x32xf32>
    %99 = tpu.matmul %97, %98, %cst_43 {dimension_numbers = #tpu.dot_dimension_numbers<[1], [0], [0], [1], [0, 0, 1, 1], [], []>} : vector<16x16xf32>, vector<16x32xf32>, vector<16x32xf32> -> vector<16x32xf32>
    %100 = vector.broadcast %81 : vector<1x32xf32> to vector<16x32xf32>
    %101 = arith.addf %100, %99 : vector<16x32xf32>
    %102 = vector.extract_strided_slice %80 {offsets = [0, 16], sizes = [16, 16], strides = [1, 1]} : vector<16x96xf32> to vector<16x16xf32>
    %103 = vector.extract_strided_slice %80 {offsets = [0, 48], sizes = [16, 16], strides = [1, 1]} : vector<16x96xf32> to vector<16x16xf32>
    %104 = vector.extract_strided_slice %80 {offsets = [0, 80], sizes = [16, 16], strides = [1, 1]} : vector<16x96xf32> to vector<16x16xf32>
    %cst_44 = arith.constant dense<0.000000e+00> : vector<16x16xf32>
    %105 = tpu.matmul %102, %103, %cst_44 {dimension_numbers = #tpu.dot_dimension_numbers<[1], [1], [0], [0], [0, 0, 1, 0], [], []>} : vector<16x16xf32>, vector<16x16xf32>, vector<16x16xf32> -> vector<16x16xf32>
    %106 = arith.addf %105, %70 : vector<16x16xf32>
    %cst_45 = arith.constant dense<0xFF800000> : vector<16xf32>
    %107 = vector.multi_reduction <maximumf>, %106, %cst_45 [1] : vector<16x16xf32> to vector<16xf32>
    %108 = vector.shape_cast %107 : vector<16xf32> to vector<16x1xf32>
    %109 = vector.broadcast %108 : vector<16x1xf32> to vector<16x16xf32>
    %110 = arith.subf %106, %109 : vector<16x16xf32>
    %111 = math.exp %110 : vector<16x16xf32>
    %cst_46 = arith.constant dense<0.000000e+00> : vector<16xf32>
    %112 = vector.multi_reduction <add>, %111, %cst_46 [1] : vector<16x16xf32> to vector<16xf32>
    %113 = vector.shape_cast %112 : vector<16xf32> to vector<16x1xf32>
    %114 = tpu.reciprocal %113 {approx = true} : vector<16x1xf32> -> vector<16x1xf32>
    %115 = vector.broadcast %114 : vector<16x1xf32> to vector<16x16xf32>
    %116 = arith.mulf %111, %115 : vector<16x16xf32>
    %cst_47 = arith.constant dense<0.000000e+00> : vector<16x16xf32>
    %117 = tpu.matmul %116, %104, %cst_47 {dimension_numbers = #tpu.dot_dimension_numbers<[1], [0], [0], [1], [0, 0, 1, 1], [], []>} : vector<16x16xf32>, vector<16x16xf32>, vector<16x16xf32> -> vector<16x16xf32>
    %118 = vector.extract_strided_slice %74 {offsets = [16, 0], sizes = [16, 32], strides = [1, 1]} : vector<32x32xf32> to vector<16x32xf32>
    %cst_48 = arith.constant dense<0.000000e+00> : vector<16x32xf32>
    %119 = tpu.matmul %117, %118, %cst_48 {dimension_numbers = #tpu.dot_dimension_numbers<[1], [0], [0], [1], [0, 0, 1, 1], [], []>} : vector<16x16xf32>, vector<16x32xf32>, vector<16x32xf32> -> vector<16x32xf32>
    %120 = arith.addf %101, %119 : vector<16x32xf32>
    %121 = arith.addf %39, %120 : vector<16x32xf32>
    %122 = vector.extract_strided_slice %72 {offsets = [2, 0], sizes = [1, 32], strides = [1, 1]} : vector<8x128xf32> to vector<1x32xf32>
    %123 = vector.extract_strided_slice %72 {offsets = [3, 0], sizes = [1, 32], strides = [1, 1]} : vector<8x128xf32> to vector<1x32xf32>
    %cst_49 = arith.constant dense<0.000000e+00> : vector<16xf32>
    %124 = vector.multi_reduction <add>, %121, %cst_49 [1] : vector<16x32xf32> to vector<16xf32>
    %125 = vector.shape_cast %124 : vector<16xf32> to vector<16x1xf32>
    %cst_50 = arith.constant 3.200000e+01 : f32
    %126 = vector.broadcast %cst_50 : f32 to vector<16x1xf32>
    %127 = arith.divf %125, %126 : vector<16x1xf32>
    %128 = vector.broadcast %127 : vector<16x1xf32> to vector<16x32xf32>
    %129 = arith.subf %121, %128 : vector<16x32xf32>
    %130 = arith.mulf %129, %129 : vector<16x32xf32>
    %cst_51 = arith.constant dense<0.000000e+00> : vector<16xf32>
    %131 = vector.multi_reduction <add>, %130, %cst_51 [1] : vector<16x32xf32> to vector<16xf32>
    %132 = vector.shape_cast %131 : vector<16xf32> to vector<16x1xf32>
    %cst_52 = arith.constant 3.200000e+01 : f32
    %133 = vector.broadcast %cst_52 : f32 to vector<16x1xf32>
    %134 = arith.divf %132, %133 : vector<16x1xf32>
    %cst_53 = arith.constant 9.99999996E-13 : f32
    %135 = vector.broadcast %cst_53 : f32 to vector<16x1xf32>
    %136 = arith.addf %134, %135 : vector<16x1xf32>
    %137 = math.rsqrt %136 : vector<16x1xf32>
    %138 = vector.broadcast %137 : vector<16x1xf32> to vector<16x32xf32>
    %139 = arith.mulf %129, %138 : vector<16x32xf32>
    %140 = vector.broadcast %122 : vector<1x32xf32> to vector<16x32xf32>
    %141 = arith.mulf %139, %140 : vector<16x32xf32>
    %142 = vector.broadcast %123 : vector<1x32xf32> to vector<16x32xf32>
    %143 = arith.addf %141, %142 : vector<16x32xf32>
    %c0_54 = arith.constant 0 : index
    %c0_55 = arith.constant 0 : index
    %c0_56 = arith.constant 0 : index
    %144 = vector.load %arg4[%c0_54, %c0_55, %c0_56] : memref<3x32x128xf32, #tpu.memory_space<vmem>>, vector<1x32x128xf32>
    %145 = vector.shape_cast %144 : vector<1x32x128xf32> to vector<32x128xf32>
    %cst_57 = arith.constant dense<0.000000e+00> : vector<16x128xf32>
    %146 = tpu.matmul %143, %145, %cst_57 {dimension_numbers = #tpu.dot_dimension_numbers<[1], [0], [0], [1], [0, 0, 1, 1], [], []>} : vector<16x32xf32>, vector<32x128xf32>, vector<16x128xf32> -> vector<16x128xf32>
    %147 = vector.extract_strided_slice %72 {offsets = [4, 0], sizes = [1, 128], strides = [1, 1]} : vector<8x128xf32> to vector<1x128xf32>
    %148 = vector.broadcast %147 : vector<1x128xf32> to vector<16x128xf32>
    %149 = arith.addf %146, %148 : vector<16x128xf32>
    %150 = arith.mulf %149, %149 : vector<16x128xf32>
    %151 = arith.mulf %149, %150 : vector<16x128xf32>
    %cst_58 = arith.constant 4.471500e-02 : f32
    %152 = vector.broadcast %cst_58 : f32 to vector<16x128xf32>
    %153 = arith.mulf %152, %151 : vector<16x128xf32>
    %154 = arith.addf %149, %153 : vector<16x128xf32>
    %cst_59 = arith.constant 0.797884583 : f32
    %155 = vector.broadcast %cst_59 : f32 to vector<16x128xf32>
    %156 = arith.mulf %155, %154 : vector<16x128xf32>
    %157 = math.tanh %156 : vector<16x128xf32>
    %cst_60 = arith.constant 1.000000e+00 : f32
    %158 = vector.broadcast %cst_60 : f32 to vector<16x128xf32>
    %159 = arith.addf %158, %157 : vector<16x128xf32>
    %cst_61 = arith.constant 5.000000e-01 : f32
    %160 = vector.broadcast %cst_61 : f32 to vector<16x128xf32>
    %161 = arith.mulf %160, %159 : vector<16x128xf32>
    %162 = arith.mulf %149, %161 : vector<16x128xf32>
    %c0_62 = arith.constant 0 : index
    %c0_63 = arith.constant 0 : index
    %c0_64 = arith.constant 0 : index
    %163 = vector.load %arg5[%c0_62, %c0_63, %c0_64] : memref<3x128x32xf32, #tpu.memory_space<vmem>>, vector<1x128x32xf32>
    %164 = vector.shape_cast %163 : vector<1x128x32xf32> to vector<128x32xf32>
    %cst_65 = arith.constant dense<0.000000e+00> : vector<16x32xf32>
    %165 = tpu.matmul %162, %164, %cst_65 {dimension_numbers = #tpu.dot_dimension_numbers<[1], [0], [0], [1], [0, 0, 1, 1], [], []>} : vector<16x128xf32>, vector<128x32xf32>, vector<16x32xf32> -> vector<16x32xf32>
    %166 = vector.extract_strided_slice %72 {offsets = [5, 0], sizes = [1, 32], strides = [1, 1]} : vector<8x128xf32> to vector<1x32xf32>
    %167 = vector.broadcast %166 : vector<1x32xf32> to vector<16x32xf32>
    %168 = arith.addf %165, %167 : vector<16x32xf32>
    %169 = arith.addf %143, %168 : vector<16x32xf32>
    %170 = vector.extract_strided_slice %72 {offsets = [6, 0], sizes = [1, 32], strides = [1, 1]} : vector<8x128xf32> to vector<1x32xf32>
    %171 = vector.extract_strided_slice %72 {offsets = [7, 0], sizes = [1, 32], strides = [1, 1]} : vector<8x128xf32> to vector<1x32xf32>
    %cst_66 = arith.constant dense<0.000000e+00> : vector<16xf32>
    %172 = vector.multi_reduction <add>, %169, %cst_66 [1] : vector<16x32xf32> to vector<16xf32>
    %173 = vector.shape_cast %172 : vector<16xf32> to vector<16x1xf32>
    %cst_67 = arith.constant 3.200000e+01 : f32
    %174 = vector.broadcast %cst_67 : f32 to vector<16x1xf32>
    %175 = arith.divf %173, %174 : vector<16x1xf32>
    %176 = vector.broadcast %175 : vector<16x1xf32> to vector<16x32xf32>
    %177 = arith.subf %169, %176 : vector<16x32xf32>
    %178 = arith.mulf %177, %177 : vector<16x32xf32>
    %cst_68 = arith.constant dense<0.000000e+00> : vector<16xf32>
    %179 = vector.multi_reduction <add>, %178, %cst_68 [1] : vector<16x32xf32> to vector<16xf32>
    %180 = vector.shape_cast %179 : vector<16xf32> to vector<16x1xf32>
    %cst_69 = arith.constant 3.200000e+01 : f32
    %181 = vector.broadcast %cst_69 : f32 to vector<16x1xf32>
    %182 = arith.divf %180, %181 : vector<16x1xf32>
    %cst_70 = arith.constant 9.99999996E-13 : f32
    %183 = vector.broadcast %cst_70 : f32 to vector<16x1xf32>
    %184 = arith.addf %182, %183 : vector<16x1xf32>
    %185 = math.rsqrt %184 : vector<16x1xf32>
    %186 = vector.broadcast %185 : vector<16x1xf32> to vector<16x32xf32>
    %187 = arith.mulf %177, %186 : vector<16x32xf32>
    %188 = vector.broadcast %170 : vector<1x32xf32> to vector<16x32xf32>
    %189 = arith.mulf %187, %188 : vector<16x32xf32>
    %190 = vector.broadcast %171 : vector<1x32xf32> to vector<16x32xf32>
    %191 = arith.addf %189, %190 : vector<16x32xf32>
    %c1 = arith.constant 1 : index
    %c0_71 = arith.constant 0 : index
    %c0_72 = arith.constant 0 : index
    %192 = vector.load %arg6[%c1, %c0_71, %c0_72] : memref<3x8x128xf32, #tpu.memory_space<vmem>>, vector<1x8x128xf32>
    %193 = vector.shape_cast %192 : vector<1x8x128xf32> to vector<8x128xf32>
    %c1_73 = arith.constant 1 : index
    %c0_74 = arith.constant 0 : index
    %c0_75 = arith.constant 0 : index
    %194 = vector.load %arg3[%c1_73, %c0_74, %c0_75] : memref<3x32x32xf32, #tpu.memory_space<vmem>>, vector<1x32x32xf32>
    %195 = vector.shape_cast %194 : vector<1x32x32xf32> to vector<32x32xf32>
    %c1_76 = arith.constant 1 : index
    %c0_77 = arith.constant 0 : index
    %c0_78 = arith.constant 0 : index
    %196 = vector.load %arg2[%c1_76, %c0_77, %c0_78] : memref<2x32x96xf32, #tpu.memory_space<vmem>>, vector<1x32x96xf32>
    %197 = vector.shape_cast %196 : vector<1x32x96xf32> to vector<32x96xf32>
    %cst_79 = arith.constant dense<0.000000e+00> : vector<16x96xf32>
    %198 = tpu.matmul %191, %197, %cst_79 {dimension_numbers = #tpu.dot_dimension_numbers<[1], [0], [0], [1], [0, 0, 1, 1], [], []>} : vector<16x32xf32>, vector<32x96xf32>, vector<16x96xf32> -> vector<16x96xf32>
    %199 = vector.extract_strided_slice %193 {offsets = [0, 0], sizes = [1, 96], strides = [1, 1]} : vector<8x128xf32> to vector<1x96xf32>
    %200 = vector.broadcast %199 : vector<1x96xf32> to vector<16x96xf32>
    %201 = arith.addf %198, %200 : vector<16x96xf32>
    %202 = vector.extract_strided_slice %193 {offsets = [1, 0], sizes = [1, 32], strides = [1, 1]} : vector<8x128xf32> to vector<1x32xf32>
    %203 = vector.extract_strided_slice %201 {offsets = [0, 0], sizes = [16, 16], strides = [1, 1]} : vector<16x96xf32> to vector<16x16xf32>
    %204 = vector.extract_strided_slice %201 {offsets = [0, 32], sizes = [16, 16], strides = [1, 1]} : vector<16x96xf32> to vector<16x16xf32>
    %205 = vector.extract_strided_slice %201 {offsets = [0, 64], sizes = [16, 16], strides = [1, 1]} : vector<16x96xf32> to vector<16x16xf32>
    %cst_80 = arith.constant dense<0.000000e+00> : vector<16x16xf32>
    %206 = tpu.matmul %203, %204, %cst_80 {dimension_numbers = #tpu.dot_dimension_numbers<[1], [1], [0], [0], [0, 0, 1, 0], [], []>} : vector<16x16xf32>, vector<16x16xf32>, vector<16x16xf32> -> vector<16x16xf32>
    %207 = arith.addf %206, %70 : vector<16x16xf32>
    %cst_81 = arith.constant dense<0xFF800000> : vector<16xf32>
    %208 = vector.multi_reduction <maximumf>, %207, %cst_81 [1] : vector<16x16xf32> to vector<16xf32>
    %209 = vector.shape_cast %208 : vector<16xf32> to vector<16x1xf32>
    %210 = vector.broadcast %209 : vector<16x1xf32> to vector<16x16xf32>
    %211 = arith.subf %207, %210 : vector<16x16xf32>
    %212 = math.exp %211 : vector<16x16xf32>
    %cst_82 = arith.constant dense<0.000000e+00> : vector<16xf32>
    %213 = vector.multi_reduction <add>, %212, %cst_82 [1] : vector<16x16xf32> to vector<16xf32>
    %214 = vector.shape_cast %213 : vector<16xf32> to vector<16x1xf32>
    %215 = tpu.reciprocal %214 {approx = true} : vector<16x1xf32> -> vector<16x1xf32>
    %216 = vector.broadcast %215 : vector<16x1xf32> to vector<16x16xf32>
    %217 = arith.mulf %212, %216 : vector<16x16xf32>
    %cst_83 = arith.constant dense<0.000000e+00> : vector<16x16xf32>
    %218 = tpu.matmul %217, %205, %cst_83 {dimension_numbers = #tpu.dot_dimension_numbers<[1], [0], [0], [1], [0, 0, 1, 1], [], []>} : vector<16x16xf32>, vector<16x16xf32>, vector<16x16xf32> -> vector<16x16xf32>
    %219 = vector.extract_strided_slice %195 {offsets = [0, 0], sizes = [16, 32], strides = [1, 1]} : vector<32x32xf32> to vector<16x32xf32>
    %cst_84 = arith.constant dense<0.000000e+00> : vector<16x32xf32>
    %220 = tpu.matmul %218, %219, %cst_84 {dimension_numbers = #tpu.dot_dimension_numbers<[1], [0], [0], [1], [0, 0, 1, 1], [], []>} : vector<16x16xf32>, vector<16x32xf32>, vector<16x32xf32> -> vector<16x32xf32>
    %221 = vector.broadcast %202 : vector<1x32xf32> to vector<16x32xf32>
    %222 = arith.addf %221, %220 : vector<16x32xf32>
    %223 = vector.extract_strided_slice %201 {offsets = [0, 16], sizes = [16, 16], strides = [1, 1]} : vector<16x96xf32> to vector<16x16xf32>
    %224 = vector.extract_strided_slice %201 {offsets = [0, 48], sizes = [16, 16], strides = [1, 1]} : vector<16x96xf32> to vector<16x16xf32>
    %225 = vector.extract_strided_slice %201 {offsets = [0, 80], sizes = [16, 16], strides = [1, 1]} : vector<16x96xf32> to vector<16x16xf32>
    %cst_85 = arith.constant dense<0.000000e+00> : vector<16x16xf32>
    %226 = tpu.matmul %223, %224, %cst_85 {dimension_numbers = #tpu.dot_dimension_numbers<[1], [1], [0], [0], [0, 0, 1, 0], [], []>} : vector<16x16xf32>, vector<16x16xf32>, vector<16x16xf32> -> vector<16x16xf32>
    %227 = arith.addf %226, %70 : vector<16x16xf32>
    %cst_86 = arith.constant dense<0xFF800000> : vector<16xf32>
    %228 = vector.multi_reduction <maximumf>, %227, %cst_86 [1] : vector<16x16xf32> to vector<16xf32>
    %229 = vector.shape_cast %228 : vector<16xf32> to vector<16x1xf32>
    %230 = vector.broadcast %229 : vector<16x1xf32> to vector<16x16xf32>
    %231 = arith.subf %227, %230 : vector<16x16xf32>
    %232 = math.exp %231 : vector<16x16xf32>
    %cst_87 = arith.constant dense<0.000000e+00> : vector<16xf32>
    %233 = vector.multi_reduction <add>, %232, %cst_87 [1] : vector<16x16xf32> to vector<16xf32>
    %234 = vector.shape_cast %233 : vector<16xf32> to vector<16x1xf32>
    %235 = tpu.reciprocal %234 {approx = true} : vector<16x1xf32> -> vector<16x1xf32>
    %236 = vector.broadcast %235 : vector<16x1xf32> to vector<16x16xf32>
    %237 = arith.mulf %232, %236 : vector<16x16xf32>
    %cst_88 = arith.constant dense<0.000000e+00> : vector<16x16xf32>
    %238 = tpu.matmul %237, %225, %cst_88 {dimension_numbers = #tpu.dot_dimension_numbers<[1], [0], [0], [1], [0, 0, 1, 1], [], []>} : vector<16x16xf32>, vector<16x16xf32>, vector<16x16xf32> -> vector<16x16xf32>
    %239 = vector.extract_strided_slice %195 {offsets = [16, 0], sizes = [16, 32], strides = [1, 1]} : vector<32x32xf32> to vector<16x32xf32>
    %cst_89 = arith.constant dense<0.000000e+00> : vector<16x32xf32>
    %240 = tpu.matmul %238, %239, %cst_89 {dimension_numbers = #tpu.dot_dimension_numbers<[1], [0], [0], [1], [0, 0, 1, 1], [], []>} : vector<16x16xf32>, vector<16x32xf32>, vector<16x32xf32> -> vector<16x32xf32>
    %241 = arith.addf %222, %240 : vector<16x32xf32>
    %242 = arith.addf %191, %241 : vector<16x32xf32>
    %243 = vector.extract_strided_slice %193 {offsets = [2, 0], sizes = [1, 32], strides = [1, 1]} : vector<8x128xf32> to vector<1x32xf32>
    %244 = vector.extract_strided_slice %193 {offsets = [3, 0], sizes = [1, 32], strides = [1, 1]} : vector<8x128xf32> to vector<1x32xf32>
    %cst_90 = arith.constant dense<0.000000e+00> : vector<16xf32>
    %245 = vector.multi_reduction <add>, %242, %cst_90 [1] : vector<16x32xf32> to vector<16xf32>
    %246 = vector.shape_cast %245 : vector<16xf32> to vector<16x1xf32>
    %cst_91 = arith.constant 3.200000e+01 : f32
    %247 = vector.broadcast %cst_91 : f32 to vector<16x1xf32>
    %248 = arith.divf %246, %247 : vector<16x1xf32>
    %249 = vector.broadcast %248 : vector<16x1xf32> to vector<16x32xf32>
    %250 = arith.subf %242, %249 : vector<16x32xf32>
    %251 = arith.mulf %250, %250 : vector<16x32xf32>
    %cst_92 = arith.constant dense<0.000000e+00> : vector<16xf32>
    %252 = vector.multi_reduction <add>, %251, %cst_92 [1] : vector<16x32xf32> to vector<16xf32>
    %253 = vector.shape_cast %252 : vector<16xf32> to vector<16x1xf32>
    %cst_93 = arith.constant 3.200000e+01 : f32
    %254 = vector.broadcast %cst_93 : f32 to vector<16x1xf32>
    %255 = arith.divf %253, %254 : vector<16x1xf32>
    %cst_94 = arith.constant 9.99999996E-13 : f32
    %256 = vector.broadcast %cst_94 : f32 to vector<16x1xf32>
    %257 = arith.addf %255, %256 : vector<16x1xf32>
    %258 = math.rsqrt %257 : vector<16x1xf32>
    %259 = vector.broadcast %258 : vector<16x1xf32> to vector<16x32xf32>
    %260 = arith.mulf %250, %259 : vector<16x32xf32>
    %261 = vector.broadcast %243 : vector<1x32xf32> to vector<16x32xf32>
    %262 = arith.mulf %260, %261 : vector<16x32xf32>
    %263 = vector.broadcast %244 : vector<1x32xf32> to vector<16x32xf32>
    %264 = arith.addf %262, %263 : vector<16x32xf32>
    %c1_95 = arith.constant 1 : index
    %c0_96 = arith.constant 0 : index
    %c0_97 = arith.constant 0 : index
    %265 = vector.load %arg4[%c1_95, %c0_96, %c0_97] : memref<3x32x128xf32, #tpu.memory_space<vmem>>, vector<1x32x128xf32>
    %266 = vector.shape_cast %265 : vector<1x32x128xf32> to vector<32x128xf32>
    %cst_98 = arith.constant dense<0.000000e+00> : vector<16x128xf32>
    %267 = tpu.matmul %264, %266, %cst_98 {dimension_numbers = #tpu.dot_dimension_numbers<[1], [0], [0], [1], [0, 0, 1, 1], [], []>} : vector<16x32xf32>, vector<32x128xf32>, vector<16x128xf32> -> vector<16x128xf32>
    %268 = vector.extract_strided_slice %193 {offsets = [4, 0], sizes = [1, 128], strides = [1, 1]} : vector<8x128xf32> to vector<1x128xf32>
    %269 = vector.broadcast %268 : vector<1x128xf32> to vector<16x128xf32>
    %270 = arith.addf %267, %269 : vector<16x128xf32>
    %271 = arith.mulf %270, %270 : vector<16x128xf32>
    %272 = arith.mulf %270, %271 : vector<16x128xf32>
    %cst_99 = arith.constant 4.471500e-02 : f32
    %273 = vector.broadcast %cst_99 : f32 to vector<16x128xf32>
    %274 = arith.mulf %273, %272 : vector<16x128xf32>
    %275 = arith.addf %270, %274 : vector<16x128xf32>
    %cst_100 = arith.constant 0.797884583 : f32
    %276 = vector.broadcast %cst_100 : f32 to vector<16x128xf32>
    %277 = arith.mulf %276, %275 : vector<16x128xf32>
    %278 = math.tanh %277 : vector<16x128xf32>
    %cst_101 = arith.constant 1.000000e+00 : f32
    %279 = vector.broadcast %cst_101 : f32 to vector<16x128xf32>
    %280 = arith.addf %279, %278 : vector<16x128xf32>
    %cst_102 = arith.constant 5.000000e-01 : f32
    %281 = vector.broadcast %cst_102 : f32 to vector<16x128xf32>
    %282 = arith.mulf %281, %280 : vector<16x128xf32>
    %283 = arith.mulf %270, %282 : vector<16x128xf32>
    %c1_103 = arith.constant 1 : index
    %c0_104 = arith.constant 0 : index
    %c0_105 = arith.constant 0 : index
    %284 = vector.load %arg5[%c1_103, %c0_104, %c0_105] : memref<3x128x32xf32, #tpu.memory_space<vmem>>, vector<1x128x32xf32>
    %285 = vector.shape_cast %284 : vector<1x128x32xf32> to vector<128x32xf32>
    %cst_106 = arith.constant dense<0.000000e+00> : vector<16x32xf32>
    %286 = tpu.matmul %283, %285, %cst_106 {dimension_numbers = #tpu.dot_dimension_numbers<[1], [0], [0], [1], [0, 0, 1, 1], [], []>} : vector<16x128xf32>, vector<128x32xf32>, vector<16x32xf32> -> vector<16x32xf32>
    %287 = vector.extract_strided_slice %193 {offsets = [5, 0], sizes = [1, 32], strides = [1, 1]} : vector<8x128xf32> to vector<1x32xf32>
    %288 = vector.broadcast %287 : vector<1x32xf32> to vector<16x32xf32>
    %289 = arith.addf %286, %288 : vector<16x32xf32>
    %290 = arith.addf %264, %289 : vector<16x32xf32>
    %291 = vector.extract_strided_slice %193 {offsets = [6, 0], sizes = [1, 32], strides = [1, 1]} : vector<8x128xf32> to vector<1x32xf32>
    %292 = vector.extract_strided_slice %193 {offsets = [7, 0], sizes = [1, 32], strides = [1, 1]} : vector<8x128xf32> to vector<1x32xf32>
    %cst_107 = arith.constant dense<0.000000e+00> : vector<16xf32>
    %293 = vector.multi_reduction <add>, %290, %cst_107 [1] : vector<16x32xf32> to vector<16xf32>
    %294 = vector.shape_cast %293 : vector<16xf32> to vector<16x1xf32>
    %cst_108 = arith.constant 3.200000e+01 : f32
    %295 = vector.broadcast %cst_108 : f32 to vector<16x1xf32>
    %296 = arith.divf %294, %295 : vector<16x1xf32>
    %297 = vector.broadcast %296 : vector<16x1xf32> to vector<16x32xf32>
    %298 = arith.subf %290, %297 : vector<16x32xf32>
    %299 = arith.mulf %298, %298 : vector<16x32xf32>
    %cst_109 = arith.constant dense<0.000000e+00> : vector<16xf32>
    %300 = vector.multi_reduction <add>, %299, %cst_109 [1] : vector<16x32xf32> to vector<16xf32>
    %301 = vector.shape_cast %300 : vector<16xf32> to vector<16x1xf32>
    %cst_110 = arith.constant 3.200000e+01 : f32
    %302 = vector.broadcast %cst_110 : f32 to vector<16x1xf32>
    %303 = arith.divf %301, %302 : vector<16x1xf32>
    %cst_111 = arith.constant 9.99999996E-13 : f32
    %304 = vector.broadcast %cst_111 : f32 to vector<16x1xf32>
    %305 = arith.addf %303, %304 : vector<16x1xf32>
    %306 = math.rsqrt %305 : vector<16x1xf32>
    %307 = vector.broadcast %306 : vector<16x1xf32> to vector<16x32xf32>
    %308 = arith.mulf %298, %307 : vector<16x32xf32>
    %309 = vector.broadcast %291 : vector<1x32xf32> to vector<16x32xf32>
    %310 = arith.mulf %308, %309 : vector<16x32xf32>
    %311 = vector.broadcast %292 : vector<1x32xf32> to vector<16x32xf32>
    %312 = arith.addf %310, %311 : vector<16x32xf32>
    %cst_112 = arith.constant dense<0.000000e+00> : vector<16x32xf32>
    %313 = tpu.matmul %312, %5, %cst_112 {dimension_numbers = #tpu.dot_dimension_numbers<[1], [0], [0], [1], [0, 0, 1, 1], [], []>} : vector<16x32xf32>, vector<32x32xf32>, vector<16x32xf32> -> vector<16x32xf32>
    %314 = vector.extract_strided_slice %7 {offsets = [2, 0], sizes = [1, 32], strides = [1, 1]} : vector<8x128xf32> to vector<1x32xf32>
    %315 = vector.broadcast %314 : vector<1x32xf32> to vector<16x32xf32>
    %316 = arith.addf %313, %315 : vector<16x32xf32>
    %317 = arith.mulf %316, %316 : vector<16x32xf32>
    %318 = arith.mulf %316, %317 : vector<16x32xf32>
    %cst_113 = arith.constant 4.471500e-02 : f32
    %319 = vector.broadcast %cst_113 : f32 to vector<16x32xf32>
    %320 = arith.mulf %319, %318 : vector<16x32xf32>
    %321 = arith.addf %316, %320 : vector<16x32xf32>
    %cst_114 = arith.constant 0.797884583 : f32
    %322 = vector.broadcast %cst_114 : f32 to vector<16x32xf32>
    %323 = arith.mulf %322, %321 : vector<16x32xf32>
    %324 = math.tanh %323 : vector<16x32xf32>
    %cst_115 = arith.constant 1.000000e+00 : f32
    %325 = vector.broadcast %cst_115 : f32 to vector<16x32xf32>
    %326 = arith.addf %325, %324 : vector<16x32xf32>
    %cst_116 = arith.constant 5.000000e-01 : f32
    %327 = vector.broadcast %cst_116 : f32 to vector<16x32xf32>
    %328 = arith.mulf %327, %326 : vector<16x32xf32>
    %329 = arith.mulf %316, %328 : vector<16x32xf32>
    %330 = vector.extract_strided_slice %7 {offsets = [3, 0], sizes = [1, 32], strides = [1, 1]} : vector<8x128xf32> to vector<1x32xf32>
    %331 = vector.extract_strided_slice %7 {offsets = [4, 0], sizes = [1, 32], strides = [1, 1]} : vector<8x128xf32> to vector<1x32xf32>
    %cst_117 = arith.constant dense<0.000000e+00> : vector<16xf32>
    %332 = vector.multi_reduction <add>, %329, %cst_117 [1] : vector<16x32xf32> to vector<16xf32>
    %333 = vector.shape_cast %332 : vector<16xf32> to vector<16x1xf32>
    %cst_118 = arith.constant 3.200000e+01 : f32
    %334 = vector.broadcast %cst_118 : f32 to vector<16x1xf32>
    %335 = arith.divf %333, %334 : vector<16x1xf32>
    %336 = vector.broadcast %335 : vector<16x1xf32> to vector<16x32xf32>
    %337 = arith.subf %329, %336 : vector<16x32xf32>
    %338 = arith.mulf %337, %337 : vector<16x32xf32>
    %cst_119 = arith.constant dense<0.000000e+00> : vector<16xf32>
    %339 = vector.multi_reduction <add>, %338, %cst_119 [1] : vector<16x32xf32> to vector<16xf32>
    %340 = vector.shape_cast %339 : vector<16xf32> to vector<16x1xf32>
    %cst_120 = arith.constant 3.200000e+01 : f32
    %341 = vector.broadcast %cst_120 : f32 to vector<16x1xf32>
    %342 = arith.divf %340, %341 : vector<16x1xf32>
    %cst_121 = arith.constant 9.99999996E-13 : f32
    %343 = vector.broadcast %cst_121 : f32 to vector<16x1xf32>
    %344 = arith.addf %342, %343 : vector<16x1xf32>
    %345 = math.rsqrt %344 : vector<16x1xf32>
    %346 = vector.broadcast %345 : vector<16x1xf32> to vector<16x32xf32>
    %347 = arith.mulf %337, %346 : vector<16x32xf32>
    %348 = vector.broadcast %330 : vector<1x32xf32> to vector<16x32xf32>
    %349 = arith.mulf %347, %348 : vector<16x32xf32>
    %350 = vector.broadcast %331 : vector<1x32xf32> to vector<16x32xf32>
    %351 = arith.addf %349, %350 : vector<16x32xf32>
    %cst_122 = arith.constant dense<0.000000e+00> : vector<16x128xf32>
    %352 = tpu.matmul %351, %3, %cst_122 {dimension_numbers = #tpu.dot_dimension_numbers<[1], [0], [0], [1], [0, 0, 1, 1], [], []>} : vector<16x32xf32>, vector<32x128xf32>, vector<16x128xf32> -> vector<16x128xf32>
    %353 = vector.extract_strided_slice %7 {offsets = [5, 0], sizes = [1, 128], strides = [1, 1]} : vector<8x128xf32> to vector<1x128xf32>
    %354 = vector.broadcast %353 : vector<1x128xf32> to vector<16x128xf32>
    %355 = arith.addf %352, %354 : vector<16x128xf32>
    %c0_123 = arith.constant 0 : index
    %c0_124 = arith.constant 0 : index
    %356 = vector.load %arg7[%c0_123, %c0_124] : memref<16x128xf32, #tpu.memory_space<vmem>>, vector<16x128xf32>
    tpu.vector_store %arg7[%c0_123, %c0_124], %355 {strides = array<i32>} : memref<16x128xf32, #tpu.memory_space<vmem>>, vector<16x128xf32>,
    return
  }
}

</mosaic_0001>

<llo_original>
// kernel: geneformer_adapter_forward.1
$region0: #{geneformer_adapter_forward.1}
  #allocation0 [shape = 'u32[]', space=smem, size = 0x4, offset = 0x4, fixed_abs, tag = 'smem constant byte address 0x4 - core index']
  #allocation1 [shape = 'u32[144,128]{1,0:T(1,128)}', space=vmem, size = 0x12000, scoped, tag = 'internal scratch']
  %s0 = inlined_call_operand.vmem [shape: s32[16,1], index: 0, kind: input, shape index: {}]
  %s1 = inlined_call_operand.vmem [shape: f32[16,32], index: 1, kind: input, shape index: {}]
  %s2 = inlined_call_operand.vmem [shape: f32[2,32,96], index: 2, kind: input, shape index: {}]
  %s3 = inlined_call_operand.vmem [shape: f32[3,32,32], index: 3, kind: input, shape index: {}]
  %s4 = inlined_call_operand.vmem [shape: f32[3,32,128], index: 4, kind: input, shape index: {}]
  %s5 = inlined_call_operand.vmem [shape: f32[3,128,32], index: 5, kind: input, shape index: {}]
  %s6 = inlined_call_operand.vmem [shape: f32[3,8,128], index: 6, kind: input, shape index: {}]
  %s7 = inlined_call_operand.hbm [shape: f32[16,128], index: 7, kind: output, shape index: {}]
  %s8 = sld [smem:[#allocation0]]
  $region38: #{geneformer_adapter_forward.1} parent=0
    _
  %s10 = ssub.s32 1, %s8
  %s11 = scalar_select 0, %s10, %s8
  $region1: #{geneformer_adapter_forward.1} parent=0
    #allocation2 [shape = 'u8[8192]{0}', space=vmem, size = 0x2000, scoped, tag = 'output window, operand 0, single buffered']
    #allocation3 [shape = 's32[1]{0}', space=sflag, size = 0x4, scoped, tag = 'scoped memory for geneformer_adapter_forward.1']
    %12 = vsyncpa [#allocation3], 0
    // Predicated region
    $region2: #{geneformer_adapter_forward.1} parent=1 // pred_check
      _
    $region3: #{geneformer_adapter_forward.1} parent=1 // pred_check_branch
      %14 = sbr.rel (0) target = $region5
    $region4: #{geneformer_adapter_forward.1} parent=1 // pred_region
      _
    $region5: #{geneformer_adapter_forward.1} parent=1 // pred_fallthru
      _
    // Predicated region
    $region6: #{geneformer_adapter_forward.1} parent=1 // pred_check
      _
    $region7: #{geneformer_adapter_forward.1} parent=1 // pred_check_branch
      %16 = sbr.rel (0) target = $region9
    $region8: #{geneformer_adapter_forward.1} parent=1 // pred_region
      _
    $region9: #{geneformer_adapter_forward.1} parent=1 // pred_fallthru
      _
    // Predicated region
    $region10: #{geneformer_adapter_forward.1} parent=1 // pred_check
      _
    $region11: #{geneformer_adapter_forward.1} parent=1 // pred_check_branch
      %18 = sbr.rel (0) target = $region13
    $region12: #{geneformer_adapter_forward.1} parent=1 // pred_region
      _
    $region13: #{geneformer_adapter_forward.1} parent=1 // pred_fallthru
      _
    // Predicated region
    $region14: #{geneformer_adapter_forward.1} parent=1 // pred_check
      _
    $region15: #{geneformer_adapter_forward.1} parent=1 // pred_check_branch
      %20 = sbr.rel (0) target = $region17
    $region16: #{geneformer_adapter_forward.1} parent=1 // pred_region
      _
    $region17: #{geneformer_adapter_forward.1} parent=1 // pred_fallthru
      _
    // Predicated region
    $region18: #{geneformer_adapter_forward.1} parent=1 // pred_check
      _
    $region19: #{geneformer_adapter_forward.1} parent=1 // pred_check_branch
      %22 = sbr.rel (0) target = $region21
    $region20: #{geneformer_adapter_forward.1} parent=1 // pred_region
      _
    $region21: #{geneformer_adapter_forward.1} parent=1 // pred_fallthru
      _
    // Predicated region
    $region22: #{geneformer_adapter_forward.1} parent=1 // pred_check
      _
    $region23: #{geneformer_adapter_forward.1} parent=1 // pred_check_branch
      %24 = sbr.rel (0) target = $region25
    $region24: #{geneformer_adapter_forward.1} parent=1 // pred_region
      _
    $region25: #{geneformer_adapter_forward.1} parent=1 // pred_fallthru
      _
    // Predicated region
    $region26: #{geneformer_adapter_forward.1} parent=1 // pred_check
      _
    $region27: #{geneformer_adapter_forward.1} parent=1 // pred_check_branch
      %26 = sbr.rel (0) target = $region29
    $region28: #{geneformer_adapter_forward.1} parent=1 // pred_region
      _
    $region29: #{geneformer_adapter_forward.1} parent=1 // pred_fallthru
      _
    %s27 = scalar_lea.vmem %s5, 256
    %v28 = vld [vmem:[%s27] sm:$0xff]
    %v29 = vld [vmem:[%s27 + $0x8] sm:$0xff]
    %v30 = vld [vmem:[%s27 + $0x10] sm:$0xff]
    %v31 = vld [vmem:[%s27 + $0x18] sm:$0xff]
    %v32 = vld [vmem:[%s27 + $0x20] sm:$0xff]
    %v33 = vld [vmem:[%s27 + $0x28] sm:$0xff]
    %v34 = vld [vmem:[%s27 + $0x30] sm:$0xff]
    %v35 = vld [vmem:[%s27 + $0x38] sm:$0xff]
    %v36 = vld [vmem:[%s27 + $0x40] sm:$0xff]
    %v37 = vld [vmem:[%s27 + $0x48] sm:$0xff]
    %v38 = vld [vmem:[%s27 + $0x50] sm:$0xff]
    %v39 = vld [vmem:[%s27 + $0x58] sm:$0xff]
    %v40 = vld [vmem:[%s27 + $0x60] sm:$0xff]
    %v41 = vld [vmem:[%s27 + $0x68] sm:$0xff]
    %v42 = vld [vmem:[%s27 + $0x70] sm:$0xff]
    %v43 = vld [vmem:[%s27 + $0x78] sm:$0xff]
    %s44 = scalar_lea.vmem %s4, 64
    %v45 = vld [vmem:[%s44] sm:$0xff]
    %v46 = vld [vmem:[%s44 + $0x8] sm:$0xff]
    %v47 = vld [vmem:[%s44 + $0x10] sm:$0xff]
    %v48 = vld [vmem:[%s44 + $0x18] sm:$0xff]
    %s49 = scalar_lea.vmem %s3, 64
    %v50 = vld [vmem:[%s49] sm:$0xff]
    %v51 = vld [vmem:[%s49 + $0x8] sm:$0xff]
    %v52 = vld [vmem:[%s49 + $0x10] sm:$0xff]
    %v53 = vld [vmem:[%s49 + $0x18] sm:$0xff]
    %s54 = scalar_lea.vmem %s6, 16
    %v55 = vld [vmem:[%s54] sm:$0xff]
    %v56 = vld [vmem:[%s0] sm:$0xff]
    %v57 = vld [vmem:[%s0 + $0x8] sm:$0xff]
    %v58 = vlaneseq
    %v59 = vand.u32 %v58, 127
    %60 = vset.pattern.permute.xlu0 0
    %61 = vperm.xlu0 %60, %v56
    %v62 = vpop.permute.xlu0 %61
    %63 = vset.pattern.permute.xlu0 0
    %64 = vperm.xlu0 %63, %v57
    %v65 = vpop.permute.xlu0 %64
    %vm66 = vcmp.eq.s32.totalorder %v59, %v62
    %vm67 = vcmp.eq.s32.totalorder %v59, %v65
    %v68 = vsel %vm66, 1.0, 0.0
    %v69 = vsel %vm67, 1.0, 0.0
    %v70 = vld [vmem:[%s1] sm:$0xff]
    %v71 = vld [vmem:[%s1 + $0x8] sm:$0xff]
    %72 = vmatprep.subr.mxu0 0.0
    %73 = vmatpush1.msra.mxu0 %v28
    %74 = vmatprep.subr.mxu0 0.0
    %75 = vmatpush1.msra.mxu0 %v29
    %76 = vmatprep.subr.mxu0 0.0
    %77 = vmatpush1.msra.mxu0 %v30
    %78 = vmatprep.subr.mxu0 0.0
    %79 = vmatpush1.msra.mxu0 %v31
    %80 = vmatprep.subr.mxu0 0.0
    %81 = vmatpush1.msra.mxu0 %v32
    %82 = vmatprep.subr.mxu0 0.0
    %83 = vmatpush1.msra.mxu0 %v33
    %84 = vmatprep.subr.mxu0 0.0
    %85 = vmatpush1.msra.mxu0 %v34
    %86 = vmatprep.subr.mxu0 0.0
    %87 = vmatpush1.msra.mxu0 %v35
    %88 = vmatprep.subr.mxu0 0.0
    %89 = vmatpush1.msra.mxu0 %v36
    %90 = vmatprep.subr.mxu0 0.0
    %91 = vmatpush1.msra.mxu0 %v37
    %92 = vmatprep.subr.mxu0 0.0
    %93 = vmatpush1.msra.mxu0 %v38
    %94 = vmatprep.subr.mxu0 0.0
    %95 = vmatpush1.msra.mxu0 %v39
    %96 = vmatprep.subr.mxu0 0.0
    %97 = vmatpush1.msra.mxu0 %v40
    %98 = vmatprep.subr.mxu0 0.0
    %99 = vmatpush1.msra.mxu0 %v41
    %100 = vmatprep.subr.mxu0 0.0
    %101 = vmatpush1.msra.mxu0 %v42
    %102 = vmatprep.subr.mxu0 0.0
    %103 = vmatpush1.msra.mxu0 %v43
    %104 = vmatprep.subr.mxu0 0.0
    %105 = vmatpush1.msra.mxu0 0.0
    %106 = vmatprep.subr.mxu0 0.0
    %107 = vmatpush1.msra.mxu0 0.0
    %108 = vmatprep.subr.mxu0 0.0
    %109 = vmatpush1.msra.mxu0 0.0
    %110 = vmatprep.subr.mxu0 0.0
    %111 = vmatpush1.msra.mxu0 0.0
    %112 = vmatprep.subr.mxu0 0.0
    %113 = vmatpush1.msra.mxu0 0.0
    %114 = vmatprep.subr.mxu0 0.0
    %115 = vmatpush1.msra.mxu0 0.0
    %116 = vmatprep.subr.mxu0 0.0
    %117 = vmatpush1.msra.mxu0 0.0
    %118 = vmatprep.subr.mxu0 0.0
    %119 = vmatpush1.msra.mxu0 0.0
    %120 = vmatprep.subr.mxu0 0.0
    %121 = vmatpush1.msra.mxu0 0.0
    %122 = vmatprep.subr.mxu0 0.0
    %123 = vmatpush1.msra.mxu0 0.0
    %124 = vmatprep.subr.mxu0 0.0
    %125 = vmatpush1.msra.mxu0 0.0
    %126 = vmatprep.subr.mxu0 0.0
    %127 = vmatpush1.msra.mxu0 0.0
    %128 = vmatprep.subr.mxu0 0.0
    %129 = vmatpush1.msra.mxu0 0.0
    %130 = vmatprep.subr.mxu0 0.0
    %131 = vmatpush1.msra.mxu0 0.0
    %132 = vmatprep.subr.mxu0 0.0
    %133 = vmatpush1.msra.mxu0 0.0
    %134 = vmatprep.subr.mxu0 0.0
    %135 = vmatpush1.msra.mxu0 0.0
    %136 = vmatprep.mubr.f32.mxu0 0.0
    %137 = vmatmul.mubr.f32.gmra.mrb[0].mxu0 %v68
    %v138 = vpop.f32.mrb[0].mxu0
    %v139 = vadd.f32 %v70, %v138
    %v140 = vpop.f32.mrb[0].mxu0
    %141 = vmatprep.mubr.f32.mxu0 0.0
    %142 = vmatmul.mubr.f32.gmra.mrb[0].mxu0 %v69
    %v143 = vpop.f32.mrb[0].mxu0
    %v144 = vadd.f32 %v71, %v143
    %v145 = vpop.f32.mrb[0].mxu0
    %146 = vdwg.mxu0
    %vm147 = vcmask 261120
    %v148 = vsel %vm147, %v139, 0.0
    %149 = vadd.xlane.f32.xlu0 %v148
    %v150 = vpop.xlane.xlu0 %149
    %v151 = vsel %vm147, %v144, 0.0
    %152 = vadd.xlane.f32.xlu0 %v151
    %v153 = vpop.xlane.xlu0 %152
    %v154 = vrcp.pop 32.0
    %v155 = vmul.f32 %v150, %v154
    %v156 = vmul.f32 %v153, %v154
    %v157 = vsub.f32 %v139, %v155
    %v158 = vsub.f32 %v144, %v156
    %v159 = vmul.f32 %v157, %v157
    %v160 = vmul.f32 %v158, %v158
    %v161 = vsel %vm147, %v159, 0.0
    %162 = vadd.xlane.f32.xlu0 %v161
    %v163 = vpop.xlane.xlu0 %162
    %v164 = vsel %vm147, %v160, 0.0
    %165 = vadd.xlane.f32.xlu0 %v164
    %v166 = vpop.xlane.xlu0 %165
    %v167 = vmul.f32 %v163, %v154
    %v168 = vmul.f32 %v166, %v154
    %v169 = vadd.f32 %v167, 1e-12
    %v170 = vadd.f32 %v168, 1e-12
    %v171 = vrsqrt.pop %v169
    %v172 = vrsqrt.pop %v170
    %v173 = vmul.f32 %v157, %v171
    %v174 = vmul.f32 %v158, %v172
    %v175 = vlaneseq
    %v176 = vshrl.u32 %v175, 7
    %v177 = vsub.s32 0, %v176
    %v178 = vrot.slane %v55, %v177
    %v179 = vmul.f32 %v173, %v178
    %v180 = vmul.f32 %v174, %v178
    %v181 = vlaneseq
    %v182 = vshrl.u32 %v181, 7
    %v183 = vsub.s32 1, %v182
    %v184 = vrot.slane %v55, %v183
    %v185 = vadd.f32 %v179, %v184
    %v186 = vadd.f32 %v180, %v184
    %v187 = vlaneseq
    %v188 = vshrl.u32 %v187, 7
    %v189 = vadd.s32 %v188, 8
    %vm190 = vcmp.lt.s32.totalorder %v188, 0
    %vm191 = vcmp.lt.s32.totalorder %v189, 0
    %vm192 = vcmp.ge.s32.totalorder %v188, 0
    %vm193 = vcmp.ge.s32.totalorder %v189, 0
    %vm194 = vcmp.lt.s32.totalorder %v188, 8
    %vm195 = vcmp.lt.s32.totalorder %v189, 8
    %vm196 = vmand %vm192, %vm194
    %vm197 = vmand %vm193, %vm195
    %vm198 = vcmp.ge.s32.totalorder %v59, 0
    %vm199 = vmand %vm196, %vm198
    %vm200 = vmand %vm197, %vm198
    %vm201 = vcmp.lt.s32.totalorder %v59, 8
    %vm202 = vmand %vm199, %vm201
    %vm203 = vmand %vm200, %vm201
    %vm204 = vmor %vm190, %vm202
    %vm205 = vmor %vm191, %vm203
    %vm206 = vcmp.ge.s32.totalorder %v188, 8
    %vm207 = vcmp.ge.s32.totalorder %v189, 8
    %vm208 = vcmp.lt.s32.totalorder %v188, 16
    %vm209 = vcmp.lt.s32.totalorder %v189, 16
    %vm210 = vmand %vm206, %vm208
    %vm211 = vmand %vm207, %vm209
    %vm212 = vcmp.ge.s32.totalorder %v59, 8
    %vm213 = vmand %vm210, %vm212
    %vm214 = vmand %vm211, %vm212
    %vm215 = vcmp.lt.s32.totalorder %v59, 16
    %vm216 = vmand %vm213, %vm215
    %vm217 = vmand %vm214, %vm215
    %vm218 = vmor %vm204, %vm216
    %vm219 = vmor %vm205, %vm217
    %v220 = vsel %vm218, 0.0, -1e+30
    %v221 = vsel %vm219, 0.0, -1e+30
    %v222 = vld [vmem:[%s6] sm:$0xff]
    %v223 = vld [vmem:[%s3] sm:$0xff]
    %v224 = vld [vmem:[%s3 + $0x8] sm:$0xff]
    %v225 = vld [vmem:[%s3 + $0x10] sm:$0xff]
    %v226 = vld [vmem:[%s3 + $0x18] sm:$0xff]
    %v227 = vld [vmem:[%s2] sm:$0xff]
    %v228 = vld [vmem:[%s2 + $0x8] sm:$0xff]
    %v229 = vld [vmem:[%s2 + $0x10] sm:$0xff]
    %v230 = vld [vmem:[%s2 + $0x18] sm:$0xff]
    %v231 = vlaneseq
    %v232 = vshrl.u32 %v231, 7
    %v233 = vsub.s32 0, %v232
    %v234 = vrot.slane %v222, %v233
    %v236 = vsel %vm147, %v185, 0
    %v239 = vsel %vm147, %v186, 0
    %241 = vmatprep.subr.mxu0 0.0
    %242 = vmatpush1.msra.mxu0 %v227
    %243 = vmatprep.subr.mxu0 0.0
    %244 = vmatpush1.msra.mxu0 %v228
    %245 = vmatprep.subr.mxu0 0.0
    %246 = vmatpush1.msra.mxu0 %v229
    %247 = vmatprep.subr.mxu0 0.0
    %248 = vmatpush1.msra.mxu0 %v230
    %249 = vmatprep.subr.mxu0 0.0
    %250 = vmatpush1.msra.mxu0 0.0
    %251 = vmatprep.subr.mxu0 0.0
    %252 = vmatpush1.msra.mxu0 0.0
    %253 = vmatprep.subr.mxu0 0.0
    %254 = vmatpush1.msra.mxu0 0.0
    %255 = vmatprep.subr.mxu0 0.0
    %256 = vmatpush1.msra.mxu0 0.0
    %257 = vmatprep.subr.mxu0 0.0
    %258 = vmatpush1.msra.mxu0 0.0
    %259 = vmatprep.subr.mxu0 0.0
    %260 = vmatpush1.msra.mxu0 0.0
    %261 = vmatprep.subr.mxu0 0.0
    %262 = vmatpush1.msra.mxu0 0.0
    %263 = vmatprep.subr.mxu0 0.0
    %264 = vmatpush1.msra.mxu0 0.0
    %265 = vmatprep.subr.mxu0 0.0
    %266 = vmatpush1.msra.mxu0 0.0
    %267 = vmatprep.subr.mxu0 0.0
    %268 = vmatpush1.msra.mxu0 0.0
    %269 = vmatprep.subr.mxu0 0.0
    %270 = vmatpush1.msra.mxu0 0.0
    %271 = vmatprep.subr.mxu0 0.0
    %272 = vmatpush1.msra.mxu0 0.0
    %273 = vmatprep.subr.mxu0 0.0
    %274 = vmatpush1.msra.mxu0 0.0
    %275 = vmatprep.subr.mxu0 0.0
    %276 = vmatpush1.msra.mxu0 0.0
    %277 = vmatprep.subr.mxu0 0.0
    %278 = vmatpush1.msra.mxu0 0.0
    %279 = vmatprep.subr.mxu0 0.0
    %280 = vmatpush1.msra.mxu0 0.0
    %281 = vmatprep.subr.mxu0 0.0
    %282 = vmatpush1.msra.mxu0 0.0
    %283 = vmatprep.subr.mxu0 0.0
    %284 = vmatpush1.msra.mxu0 0.0
    %285 = vmatprep.subr.mxu0 0.0
    %286 = vmatpush1.msra.mxu0 0.0
    %287 = vmatprep.subr.mxu0 0.0
    %288 = vmatpush1.msra.mxu0 0.0
    %289 = vmatprep.subr.mxu0 0.0
    %290 = vmatpush1.msra.mxu0 0.0
    %291 = vmatprep.subr.mxu0 0.0
    %292 = vmatpush1.msra.mxu0 0.0
    %293 = vmatprep.subr.mxu0 0.0
    %294 = vmatpush1.msra.mxu0 0.0
    %295 = vmatprep.subr.mxu0 0.0
    %296 = vmatpush1.msra.mxu0 0.0
    %297 = vmatprep.subr.mxu0 0.0
    %298 = vmatpush1.msra.mxu0 0.0
    %299 = vmatprep.subr.mxu0 0.0
    %300 = vmatpush1.msra.mxu0 0.0
    %301 = vmatprep.subr.mxu0 0.0
    %302 = vmatpush1.msra.mxu0 0.0
    %303 = vmatprep.subr.mxu0 0.0
    %304 = vmatpush1.msra.mxu0 0.0
    %305 = vmatprep.mubr.f32.mxu0 0.0
    %306 = vmatmul.mubr.f32.gmra.mrb[0].mxu0 %v236
    %v307 = vpop.f32.mrb[0].mxu0
    %v308 = vadd.f32 %v234, %v307
    %v309 = vpop.f32.mrb[0].mxu0
    %310 = vmatprep.mubr.f32.mxu0 0.0
    %311 = vmatmul.mubr.f32.gmra.mrb[0].mxu0 %v239
    %v312 = vpop.f32.mrb[0].mxu0
    %v313 = vadd.f32 %v234, %v312
    %v314 = vpop.f32.mrb[0].mxu0
    %315 = vdwg.mxu0
    %318 = vrot.lane.b32.xlu0 %v308, 96
    %v319 = vpop.permute.xlu0 %318
    %320 = vrot.lane.b32.xlu0 %v313, 96
    %v321 = vpop.permute.xlu0 %320
    %vm322 = vcmask 130048
    %v323 = vsel %vm322, %v308, 0
    %v325 = vsel %vm322, %v313, 0
    %v327 = vsel %vm322, %v319, 0
    %v329 = vsel %vm322, %v321, 0
    %331 = vmatprep.subr.mxu0 0.0
    %332 = vmatpush1.xpose.msra.mxu0 %v327
    %333 = vmatprep.subr.mxu0 0.0
    %334 = vmatpush1.xpose.msra.mxu0 %v329
    %335 = vmatprep.subr.mxu0 0.0
    %336 = vmatpush1.xpose.msra.mxu0 0.0
    %337 = vmatprep.subr.mxu0 0.0
    %338 = vmatpush1.xpose.msra.mxu0 0.0
    %339 = vmatprep.subr.mxu0 0.0
    %340 = vmatpush1.xpose.msra.mxu0 0.0
    %341 = vmatprep.subr.mxu0 0.0
    %342 = vmatpush1.xpose.msra.mxu0 0.0
    %343 = vmatprep.subr.mxu0 0.0
    %344 = vmatpush1.xpose.msra.mxu0 0.0
    %345 = vmatprep.subr.mxu0 0.0
    %346 = vmatpush1.xpose.msra.mxu0 0.0
    %347 = vmatprep.subr.mxu0 0.0
    %348 = vmatpush1.xpose.msra.mxu0 0.0
    %349 = vmatprep.subr.mxu0 0.0
    %350 = vmatpush1.xpose.msra.mxu0 0.0
    %351 = vmatprep.subr.mxu0 0.0
    %352 = vmatpush1.xpose.msra.mxu0 0.0
    %353 = vmatprep.subr.mxu0 0.0
    %354 = vmatpush1.xpose.msra.mxu0 0.0
    %355 = vmatprep.subr.mxu0 0.0
    %356 = vmatpush1.xpose.msra.mxu0 0.0
    %357 = vmatprep.subr.mxu0 0.0
    %358 = vmatpush1.xpose.msra.mxu0 0.0
    %359 = vmatprep.subr.mxu0 0.0
    %360 = vmatpush1.xpose.msra.mxu0 0.0
    %361 = vmatprep.subr.mxu0 0.0
    %362 = vmatpush1.xpose.msra.mxu0 0.0
    %363 = vmatprep.subr.mxu0 0.0
    %364 = vmatpush1.xpose.msra.mxu0 0.0
    %365 = vmatprep.subr.mxu0 0.0
    %366 = vmatpush1.xpose.msra.mxu0 0.0
    %367 = vmatprep.subr.mxu0 0.0
    %368 = vmatpush1.xpose.msra.mxu0 0.0
    %369 = vmatprep.subr.mxu0 0.0
    %370 = vmatpush1.xpose.msra.mxu0 0.0
    %371 = vmatprep.subr.mxu0 0.0
    %372 = vmatpush1.xpose.msra.mxu0 0.0
    %373 = vmatprep.subr.mxu0 0.0
    %374 = vmatpush1.xpose.msra.mxu0 0.0
    %375 = vmatprep.subr.mxu0 0.0
    %376 = vmatpush1.xpose.msra.mxu0 0.0
    %377 = vmatprep.subr.mxu0 0.0
    %378 = vmatpush1.xpose.msra.mxu0 0.0
    %379 = vmatprep.subr.mxu0 0.0
    %380 = vmatpush1.xpose.msra.mxu0 0.0
    %381 = vmatprep.subr.mxu0 0.0
    %382 = vmatpush1.xpose.msra.mxu0 0.0
    %383 = vmatprep.subr.mxu0 0.0
    %384 = vmatpush1.xpose.msra.mxu0 0.0
    %385 = vmatprep.subr.mxu0 0.0
    %386 = vmatpush1.xpose.msra.mxu0 0.0
    %387 = vmatprep.subr.mxu0 0.0
    %388 = vmatpush1.xpose.msra.mxu0 0.0
    %389 = vmatprep.subr.mxu0 0.0
    %390 = vmatpush1.xpose.msra.mxu0 0.0
    %391 = vmatprep.subr.mxu0 0.0
    %392 = vmatpush1.xpose.msra.mxu0 0.0
    %393 = vmatprep.subr.mxu0 0.0
    %394 = vmatpush1.xpose.msra.mxu0 0.0
    %395 = vmatprep.mubr.f32.mxu0 0.0
    %396 = vmatmul.mubr.f32.gmra.mrb[0].mxu0 %v323
    %v397 = vpop.f32.mrb[0].mxu0
    %v398 = vadd.f32 %v220, %v397
    %v399 = vpop.f32.mrb[0].mxu0
    %400 = vmatprep.mubr.f32.mxu0 0.0
    %401 = vmatmul.mubr.f32.gmra.mrb[0].mxu0 %v325
    %v402 = vpop.f32.mrb[0].mxu0
    %v403 = vadd.f32 %v221, %v402
    %v404 = vpop.f32.mrb[0].mxu0
    %405 = vdwg.mxu0
    %v406 = vsel %vm322, %v398, -inf
    %407 = vmax.xlane.f32.xlu0 %v406
    %v408 = vpop.xlane.xlu0 %407
    %v409 = vsel %vm322, %v403, -inf
    %410 = vmax.xlane.f32.xlu0 %v409
    %v411 = vpop.xlane.xlu0 %410
    %v412 = vsub.f32 %v398, %v408
    %v413 = vsub.f32 %v403, %v411
    %v414 = vmul.f32 %v412, 1.442695
    %v415 = vpow.pop %v414
    %v416 = vmul.f32 %v413, 1.442695
    %v417 = vpow.pop %v416
    %v418 = vsel %vm322, %v415, 0.0
    %419 = vadd.xlane.f32.xlu0 %v418
    %v420 = vpop.xlane.xlu0 %419
    %v421 = vsel %vm322, %v417, 0.0
    %422 = vadd.xlane.f32.xlu0 %v421
    %v423 = vpop.xlane.xlu0 %422
    %v424 = vrcp.pop %v420
    %v425 = vrcp.pop %v423
    %v426 = vmul.f32 %v415, %v424
    %v427 = vmul.f32 %v417, %v425
    %428 = vrot.lane.b32.xlu0 %v308, 64
    %v429 = vpop.permute.xlu0 %428
    %430 = vrot.lane.b32.xlu0 %v313, 64
    %v431 = vpop.permute.xlu0 %430
    %v435 = vsel %vm322, %v426, 0
    %v438 = vsel %vm322, %v427, 0
    %440 = vmatprep.subr.mxu0 0.0
    %441 = vmatpush1.msra.mxu0 %v429
    %442 = vmatprep.subr.mxu0 0.0
    %443 = vmatpush1.msra.mxu0 %v431
    %444 = vmatprep.subr.mxu0 0.0
    %445 = vmatpush1.msra.mxu0 0.0
    %446 = vmatprep.subr.mxu0 0.0
    %447 = vmatpush1.msra.mxu0 0.0
    %448 = vmatprep.subr.mxu0 0.0
    %449 = vmatpush1.msra.mxu0 0.0
    %450 = vmatprep.subr.mxu0 0.0
    %451 = vmatpush1.msra.mxu0 0.0
    %452 = vmatprep.subr.mxu0 0.0
    %453 = vmatpush1.msra.mxu0 0.0
    %454 = vmatprep.subr.mxu0 0.0
    %455 = vmatpush1.msra.mxu0 0.0
    %456 = vmatprep.subr.mxu0 0.0
    %457 = vmatpush1.msra.mxu0 0.0
    %458 = vmatprep.subr.mxu0 0.0
    %459 = vmatpush1.msra.mxu0 0.0
    %460 = vmatprep.subr.mxu0 0.0
    %461 = vmatpush1.msra.mxu0 0.0
    %462 = vmatprep.subr.mxu0 0.0
    %463 = vmatpush1.msra.mxu0 0.0
    %464 = vmatprep.subr.mxu0 0.0
    %465 = vmatpush1.msra.mxu0 0.0
    %466 = vmatprep.subr.mxu0 0.0
    %467 = vmatpush1.msra.mxu0 0.0
    %468 = vmatprep.subr.mxu0 0.0
    %469 = vmatpush1.msra.mxu0 0.0
    %470 = vmatprep.subr.mxu0 0.0
    %471 = vmatpush1.msra.mxu0 0.0
    %472 = vmatprep.subr.mxu0 0.0
    %473 = vmatpush1.msra.mxu0 0.0
    %474 = vmatprep.subr.mxu0 0.0
    %475 = vmatpush1.msra.mxu0 0.0
    %476 = vmatprep.subr.mxu0 0.0
    %477 = vmatpush1.msra.mxu0 0.0
    %478 = vmatprep.subr.mxu0 0.0
    %479 = vmatpush1.msra.mxu0 0.0
    %480 = vmatprep.subr.mxu0 0.0
    %481 = vmatpush1.msra.mxu0 0.0
    %482 = vmatprep.subr.mxu0 0.0
    %483 = vmatpush1.msra.mxu0 0.0
    %484 = vmatprep.subr.mxu0 0.0
    %485 = vmatpush1.msra.mxu0 0.0
    %486 = vmatprep.subr.mxu0 0.0
    %487 = vmatpush1.msra.mxu0 0.0
    %488 = vmatprep.subr.mxu0 0.0
    %489 = vmatpush1.msra.mxu0 0.0
    %490 = vmatprep.subr.mxu0 0.0
    %491 = vmatpush1.msra.mxu0 0.0
    %492 = vmatprep.subr.mxu0 0.0
    %493 = vmatpush1.msra.mxu0 0.0
    %494 = vmatprep.subr.mxu0 0.0
    %495 = vmatpush1.msra.mxu0 0.0
    %496 = vmatprep.subr.mxu0 0.0
    %497 = vmatpush1.msra.mxu0 0.0
    %498 = vmatprep.subr.mxu0 0.0
    %499 = vmatpush1.msra.mxu0 0.0
    %500 = vmatprep.subr.mxu0 0.0
    %501 = vmatpush1.msra.mxu0 0.0
    %502 = vmatprep.subr.mxu0 0.0
    %503 = vmatpush1.msra.mxu0 0.0
    %504 = vmatprep.mubr.f32.mxu0 0.0
    %505 = vmatmul.mubr.f32.gmra.mrb[0].mxu0 %v435
    %v506 = vpop.f32.mrb[0].mxu0
    %v507 = vadd.f32 0.0, %v506
    %v508 = vpop.f32.mrb[0].mxu0
    %509 = vmatprep.mubr.f32.mxu0 0.0
    %510 = vmatmul.mubr.f32.gmra.mrb[0].mxu0 %v438
    %v511 = vpop.f32.mrb[0].mxu0
    %v512 = vadd.f32 0.0, %v511
    %v513 = vpop.f32.mrb[0].mxu0
    %514 = vdwg.mxu0
    %v516 = vsel %vm322, %v507, 0
    %v519 = vsel %vm322, %v512, 0
    %521 = vmatprep.subr.mxu0 0.0
    %522 = vmatpush1.msra.mxu0 %v223
    %523 = vmatprep.subr.mxu0 0.0
    %524 = vmatpush1.msra.mxu0 %v224
    %525 = vmatprep.subr.mxu0 0.0
    %526 = vmatpush1.msra.mxu0 0.0
    %527 = vmatprep.subr.mxu0 0.0
    %528 = vmatpush1.msra.mxu0 0.0
    %529 = vmatprep.subr.mxu0 0.0
    %530 = vmatpush1.msra.mxu0 0.0
    %531 = vmatprep.subr.mxu0 0.0
    %532 = vmatpush1.msra.mxu0 0.0
    %533 = vmatprep.subr.mxu0 0.0
    %534 = vmatpush1.msra.mxu0 0.0
    %535 = vmatprep.subr.mxu0 0.0
    %536 = vmatpush1.msra.mxu0 0.0
    %537 = vmatprep.subr.mxu0 0.0
    %538 = vmatpush1.msra.mxu0 0.0
    %539 = vmatprep.subr.mxu0 0.0
    %540 = vmatpush1.msra.mxu0 0.0
    %541 = vmatprep.subr.mxu0 0.0
    %542 = vmatpush1.msra.mxu0 0.0
    %543 = vmatprep.subr.mxu0 0.0
    %544 = vmatpush1.msra.mxu0 0.0
    %545 = vmatprep.subr.mxu0 0.0
    %546 = vmatpush1.msra.mxu0 0.0
    %547 = vmatprep.subr.mxu0 0.0
    %548 = vmatpush1.msra.mxu0 0.0
    %549 = vmatprep.subr.mxu0 0.0
    %550 = vmatpush1.msra.mxu0 0.0
    %551 = vmatprep.subr.mxu0 0.0
    %552 = vmatpush1.msra.mxu0 0.0
    %553 = vmatprep.subr.mxu0 0.0
    %554 = vmatpush1.msra.mxu0 0.0
    %555 = vmatprep.subr.mxu0 0.0
    %556 = vmatpush1.msra.mxu0 0.0
    %557 = vmatprep.subr.mxu0 0.0
    %558 = vmatpush1.msra.mxu0 0.0
    %559 = vmatprep.subr.mxu0 0.0
    %560 = vmatpush1.msra.mxu0 0.0
    %561 = vmatprep.subr.mxu0 0.0
    %562 = vmatpush1.msra.mxu0 0.0
    %563 = vmatprep.subr.mxu0 0.0
    %564 = vmatpush1.msra.mxu0 0.0
    %565 = vmatprep.subr.mxu0 0.0
    %566 = vmatpush1.msra.mxu0 0.0
    %567 = vmatprep.subr.mxu0 0.0
    %568 = vmatpush1.msra.mxu0 0.0
    %569 = vmatprep.subr.mxu0 0.0
    %570 = vmatpush1.msra.mxu0 0.0
    %571 = vmatprep.subr.mxu0 0.0
    %572 = vmatpush1.msra.mxu0 0.0
    %573 = vmatprep.subr.mxu0 0.0
    %574 = vmatpush1.msra.mxu0 0.0
    %575 = vmatprep.subr.mxu0 0.0
    %576 = vmatpush1.msra.mxu0 0.0
    %577 = vmatprep.subr.mxu0 0.0
    %578 = vmatpush1.msra.mxu0 0.0
    %579 = vmatprep.subr.mxu0 0.0
    %580 = vmatpush1.msra.mxu0 0.0
    %581 = vmatprep.subr.mxu0 0.0
    %582 = vmatpush1.msra.mxu0 0.0
    %583 = vmatprep.subr.mxu0 0.0
    %584 = vmatpush1.msra.mxu0 0.0
    %585 = vmatprep.mubr.f32.mxu0 0.0
    %586 = vmatmul.mubr.f32.gmra.mrb[0].mxu0 %v516
    %v587 = vpop.f32.mrb[0].mxu0
    %v588 = vadd.f32 0.0, %v587
    %v589 = vpop.f32.mrb[0].mxu0
    %590 = vmatprep.mubr.f32.mxu0 0.0
    %591 = vmatmul.mubr.f32.gmra.mrb[0].mxu0 %v519
    %v592 = vpop.f32.mrb[0].mxu0
    %v593 = vadd.f32 0.0, %v592
    %v594 = vpop.f32.mrb[0].mxu0
    %595 = vdwg.mxu0
    %v596 = vlaneseq
    %v597 = vshrl.u32 %v596, 7
    %v598 = vsub.s32 1, %v597
    %v599 = vrot.slane %v222, %v598
    %v600 = vadd.f32 %v599, %v588
    %v601 = vadd.f32 %v599, %v593
    %602 = vrot.lane.b32.xlu0 %v308, 112
    %v603 = vpop.permute.xlu0 %602
    %604 = vrot.lane.b32.xlu0 %v313, 112
    %v605 = vpop.permute.xlu0 %604
    %606 = vrot.lane.b32.xlu0 %v308, 80
    %v607 = vpop.permute.xlu0 %606
    %608 = vrot.lane.b32.xlu0 %v313, 80
    %v609 = vpop.permute.xlu0 %608
    %v610 = vsel %vm322, %v603, 0
    %v612 = vsel %vm322, %v605, 0
    %v614 = vsel %vm322, %v607, 0
    %v616 = vsel %vm322, %v609, 0
    %618 = vmatprep.subr.mxu0 0.0
    %619 = vmatpush1.xpose.msra.mxu0 %v614
    %620 = vmatprep.subr.mxu0 0.0
    %621 = vmatpush1.xpose.msra.mxu0 %v616
    %622 = vmatprep.subr.mxu0 0.0
    %623 = vmatpush1.xpose.msra.mxu0 0.0
    %624 = vmatprep.subr.mxu0 0.0
    %625 = vmatpush1.xpose.msra.mxu0 0.0
    %626 = vmatprep.subr.mxu0 0.0
    %627 = vmatpush1.xpose.msra.mxu0 0.0
    %628 = vmatprep.subr.mxu0 0.0
    %629 = vmatpush1.xpose.msra.mxu0 0.0
    %630 = vmatprep.subr.mxu0 0.0
    %631 = vmatpush1.xpose.msra.mxu0 0.0
    %632 = vmatprep.subr.mxu0 0.0
    %633 = vmatpush1.xpose.msra.mxu0 0.0
    %634 = vmatprep.subr.mxu0 0.0
    %635 = vmatpush1.xpose.msra.mxu0 0.0
    %636 = vmatprep.subr.mxu0 0.0
    %637 = vmatpush1.xpose.msra.mxu0 0.0
    %638 = vmatprep.subr.mxu0 0.0
    %639 = vmatpush1.xpose.msra.mxu0 0.0
    %640 = vmatprep.subr.mxu0 0.0
    %641 = vmatpush1.xpose.msra.mxu0 0.0
    %642 = vmatprep.subr.mxu0 0.0
    %643 = vmatpush1.xpose.msra.mxu0 0.0
    %644 = vmatprep.subr.mxu0 0.0
    %645 = vmatpush1.xpose.msra.mxu0 0.0
    %646 = vmatprep.subr.mxu0 0.0
    %647 = vmatpush1.xpose.msra.mxu0 0.0
    %648 = vmatprep.subr.mxu0 0.0
    %649 = vmatpush1.xpose.msra.mxu0 0.0
    %650 = vmatprep.subr.mxu0 0.0
    %651 = vmatpush1.xpose.msra.mxu0 0.0
    %652 = vmatprep.subr.mxu0 0.0
    %653 = vmatpush1.xpose.msra.mxu0 0.0
    %654 = vmatprep.subr.mxu0 0.0
    %655 = vmatpush1.xpose.msra.mxu0 0.0
    %656 = vmatprep.subr.mxu0 0.0
    %657 = vmatpush1.xpose.msra.mxu0 0.0
    %658 = vmatprep.subr.mxu0 0.0
    %659 = vmatpush1.xpose.msra.mxu0 0.0
    %660 = vmatprep.subr.mxu0 0.0
    %661 = vmatpush1.xpose.msra.mxu0 0.0
    %662 = vmatprep.subr.mxu0 0.0
    %663 = vmatpush1.xpose.msra.mxu0 0.0
    %664 = vmatprep.subr.mxu0 0.0
    %665 = vmatpush1.xpose.msra.mxu0 0.0
    %666 = vmatprep.subr.mxu0 0.0
    %667 = vmatpush1.xpose.msra.mxu0 0.0
    %668 = vmatprep.subr.mxu0 0.0
    %669 = vmatpush1.xpose.msra.mxu0 0.0
    %670 = vmatprep.subr.mxu0 0.0
    %671 = vmatpush1.xpose.msra.mxu0 0.0
    %672 = vmatprep.subr.mxu0 0.0
    %673 = vmatpush1.xpose.msra.mxu0 0.0
    %674 = vmatprep.subr.mxu0 0.0
    %675 = vmatpush1.xpose.msra.mxu0 0.0
    %676 = vmatprep.subr.mxu0 0.0
    %677 = vmatpush1.xpose.msra.mxu0 0.0
    %678 = vmatprep.subr.mxu0 0.0
    %679 = vmatpush1.xpose.msra.mxu0 0.0
    %680 = vmatprep.subr.mxu0 0.0
    %681 = vmatpush1.xpose.msra.mxu0 0.0
    %682 = vmatprep.mubr.f32.mxu0 0.0
    %683 = vmatmul.mubr.f32.gmra.mrb[0].mxu0 %v610
    %v684 = vpop.f32.mrb[0].mxu0
    %v685 = vadd.f32 %v220, %v684
    %v686 = vpop.f32.mrb[0].mxu0
    %687 = vmatprep.mubr.f32.mxu0 0.0
    %688 = vmatmul.mubr.f32.gmra.mrb[0].mxu0 %v612
    %v689 = vpop.f32.mrb[0].mxu0
    %v690 = vadd.f32 %v221, %v689
    %v691 = vpop.f32.mrb[0].mxu0
    %692 = vdwg.mxu0
    %v693 = vsel %vm322, %v685, -inf
    %694 = vmax.xlane.f32.xlu0 %v693
    %v695 = vpop.xlane.xlu0 %694
    %v696 = vsel %vm322, %v690, -inf
    %697 = vmax.xlane.f32.xlu0 %v696
    %v698 = vpop.xlane.xlu0 %697
    %v699 = vsub.f32 %v685, %v695
    %v700 = vsub.f32 %v690, %v698
    %v701 = vmul.f32 %v699, 1.442695
    %v702 = vpow.pop %v701
    %v703 = vmul.f32 %v700, 1.442695
    %v704 = vpow.pop %v703
    %v705 = vsel %vm322, %v702, 0.0
    %706 = vadd.xlane.f32.xlu0 %v705
    %v707 = vpop.xlane.xlu0 %706
    %v708 = vsel %vm322, %v704, 0.0
    %709 = vadd.xlane.f32.xlu0 %v708
    %v710 = vpop.xlane.xlu0 %709
    %v711 = vrcp.pop %v707
    %v712 = vrcp.pop %v710
    %v713 = vmul.f32 %v702, %v711
    %v714 = vmul.f32 %v704, %v712
    %715 = vrot.lane.b32.xlu0 %v308, 48
    %v716 = vpop.permute.xlu0 %715
    %717 = vrot.lane.b32.xlu0 %v313, 48
    %v718 = vpop.permute.xlu0 %717
    %v722 = vsel %vm322, %v713, 0
    %v725 = vsel %vm322, %v714, 0
    %727 = vmatprep.subr.mxu0 0.0
    %728 = vmatpush1.msra.mxu0 %v716
    %729 = vmatprep.subr.mxu0 0.0
    %730 = vmatpush1.msra.mxu0 %v718
    %731 = vmatprep.subr.mxu0 0.0
    %732 = vmatpush1.msra.mxu0 0.0
    %733 = vmatprep.subr.mxu0 0.0
    %734 = vmatpush1.msra.mxu0 0.0
    %735 = vmatprep.subr.mxu0 0.0
    %736 = vmatpush1.msra.mxu0 0.0
    %737 = vmatprep.subr.mxu0 0.0
    %738 = vmatpush1.msra.mxu0 0.0
    %739 = vmatprep.subr.mxu0 0.0
    %740 = vmatpush1.msra.mxu0 0.0
    %741 = vmatprep.subr.mxu0 0.0
    %742 = vmatpush1.msra.mxu0 0.0
    %743 = vmatprep.subr.mxu0 0.0
    %744 = vmatpush1.msra.mxu0 0.0
    %745 = vmatprep.subr.mxu0 0.0
    %746 = vmatpush1.msra.mxu0 0.0
    %747 = vmatprep.subr.mxu0 0.0
    %748 = vmatpush1.msra.mxu0 0.0
    %749 = vmatprep.subr.mxu0 0.0
    %750 = vmatpush1.msra.mxu0 0.0
    %751 = vmatprep.subr.mxu0 0.0
    %752 = vmatpush1.msra.mxu0 0.0
    %753 = vmatprep.subr.mxu0 0.0
    %754 = vmatpush1.msra.mxu0 0.0
    %755 = vmatprep.subr.mxu0 0.0
    %756 = vmatpush1.msra.mxu0 0.0
    %757 = vmatprep.subr.mxu0 0.0
    %758 = vmatpush1.msra.mxu0 0.0
    %759 = vmatprep.subr.mxu0 0.0
    %760 = vmatpush1.msra.mxu0 0.0
    %761 = vmatprep.subr.mxu0 0.0
    %762 = vmatpush1.msra.mxu0 0.0
    %763 = vmatprep.subr.mxu0 0.0
    %764 = vmatpush1.msra.mxu0 0.0
    %765 = vmatprep.subr.mxu0 0.0
    %766 = vmatpush1.msra.mxu0 0.0
    %767 = vmatprep.subr.mxu0 0.0
    %768 = vmatpush1.msra.mxu0 0.0
    %769 = vmatprep.subr.mxu0 0.0
    %770 = vmatpush1.msra.mxu0 0.0
    %771 = vmatprep.subr.mxu0 0.0
    %772 = vmatpush1.msra.mxu0 0.0
    %773 = vmatprep.subr.mxu0 0.0
    %774 = vmatpush1.msra.mxu0 0.0
    %775 = vmatprep.subr.mxu0 0.0
    %776 = vmatpush1.msra.mxu0 0.0
    %777 = vmatprep.subr.mxu0 0.0
    %778 = vmatpush1.msra.mxu0 0.0
    %779 = vmatprep.subr.mxu0 0.0
    %780 = vmatpush1.msra.mxu0 0.0
    %781 = vmatprep.subr.mxu0 0.0
    %782 = vmatpush1.msra.mxu0 0.0
    %783 = vmatprep.subr.mxu0 0.0
    %784 = vmatpush1.msra.mxu0 0.0
    %785 = vmatprep.subr.mxu0 0.0
    %786 = vmatpush1.msra.mxu0 0.0
    %787 = vmatprep.subr.mxu0 0.0
    %788 = vmatpush1.msra.mxu0 0.0
    %789 = vmatprep.subr.mxu0 0.0
    %790 = vmatpush1.msra.mxu0 0.0
    %791 = vmatprep.mubr.f32.mxu0 0.0
    %792 = vmatmul.mubr.f32.gmra.mrb[0].mxu0 %v722
    %v793 = vpop.f32.mrb[0].mxu0
    %v794 = vadd.f32 0.0, %v793
    %v795 = vpop.f32.mrb[0].mxu0
    %796 = vmatprep.mubr.f32.mxu0 0.0
    %797 = vmatmul.mubr.f32.gmra.mrb[0].mxu0 %v725
    %v798 = vpop.f32.mrb[0].mxu0
    %v799 = vadd.f32 0.0, %v798
    %v800 = vpop.f32.mrb[0].mxu0
    %801 = vdwg.mxu0
    %v803 = vsel %vm322, %v794, 0
    %v806 = vsel %vm322, %v799, 0
    %808 = vmatprep.subr.mxu0 0.0
    %809 = vmatpush1.msra.mxu0 %v225
    %810 = vmatprep.subr.mxu0 0.0
    %811 = vmatpush1.msra.mxu0 %v226
    %812 = vmatprep.subr.mxu0 0.0
    %813 = vmatpush1.msra.mxu0 0.0
    %814 = vmatprep.subr.mxu0 0.0
    %815 = vmatpush1.msra.mxu0 0.0
    %816 = vmatprep.subr.mxu0 0.0
    %817 = vmatpush1.msra.mxu0 0.0
    %818 = vmatprep.subr.mxu0 0.0
    %819 = vmatpush1.msra.mxu0 0.0
    %820 = vmatprep.subr.mxu0 0.0
    %821 = vmatpush1.msra.mxu0 0.0
    %822 = vmatprep.subr.mxu0 0.0
    %823 = vmatpush1.msra.mxu0 0.0
    %824 = vmatprep.subr.mxu0 0.0
    %825 = vmatpush1.msra.mxu0 0.0
    %826 = vmatprep.subr.mxu0 0.0
    %827 = vmatpush1.msra.mxu0 0.0
    %828 = vmatprep.subr.mxu0 0.0
    %829 = vmatpush1.msra.mxu0 0.0
    %830 = vmatprep.subr.mxu0 0.0
    %831 = vmatpush1.msra.mxu0 0.0
    %832 = vmatprep.subr.mxu0 0.0
    %833 = vmatpush1.msra.mxu0 0.0
    %834 = vmatprep.subr.mxu0 0.0
    %835 = vmatpush1.msra.mxu0 0.0
    %836 = vmatprep.subr.mxu0 0.0
    %837 = vmatpush1.msra.mxu0 0.0
    %838 = vmatprep.subr.mxu0 0.0
    %839 = vmatpush1.msra.mxu0 0.0
    %840 = vmatprep.subr.mxu0 0.0
    %841 = vmatpush1.msra.mxu0 0.0
    %842 = vmatprep.subr.mxu0 0.0
    %843 = vmatpush1.msra.mxu0 0.0
    %844 = vmatprep.subr.mxu0 0.0
    %845 = vmatpush1.msra.mxu0 0.0
    %846 = vmatprep.subr.mxu0 0.0
    %847 = vmatpush1.msra.mxu0 0.0
    %848 = vmatprep.subr.mxu0 0.0
    %849 = vmatpush1.msra.mxu0 0.0
    %850 = vmatprep.subr.mxu0 0.0
    %851 = vmatpush1.msra.mxu0 0.0
    %852 = vmatprep.subr.mxu0 0.0
    %853 = vmatpush1.msra.mxu0 0.0
    %854 = vmatprep.subr.mxu0 0.0
    %855 = vmatpush1.msra.mxu0 0.0
    %856 = vmatprep.subr.mxu0 0.0
    %857 = vmatpush1.msra.mxu0 0.0
    %858 = vmatprep.subr.mxu0 0.0
    %859 = vmatpush1.msra.mxu0 0.0
    %860 = vmatprep.subr.mxu0 0.0
    %861 = vmatpush1.msra.mxu0 0.0
    %862 = vmatprep.subr.mxu0 0.0
    %863 = vmatpush1.msra.mxu0 0.0
    %864 = vmatprep.subr.mxu0 0.0
    %865 = vmatpush1.msra.mxu0 0.0
    %866 = vmatprep.subr.mxu0 0.0
    %867 = vmatpush1.msra.mxu0 0.0
    %868 = vmatprep.subr.mxu0 0.0
    %869 = vmatpush1.msra.mxu0 0.0
    %870 = vmatprep.subr.mxu0 0.0
    %871 = vmatpush1.msra.mxu0 0.0
    %872 = vmatprep.mubr.f32.mxu0 0.0
    %873 = vmatmul.mubr.f32.gmra.mrb[0].mxu0 %v803
    %v874 = vpop.f32.mrb[0].mxu0
    %v875 = vadd.f32 0.0, %v874
    %v876 = vpop.f32.mrb[0].mxu0
    %877 = vmatprep.mubr.f32.mxu0 0.0
    %878 = vmatmul.mubr.f32.gmra.mrb[0].mxu0 %v806
    %v879 = vpop.f32.mrb[0].mxu0
    %v880 = vadd.f32 0.0, %v879
    %v881 = vpop.f32.mrb[0].mxu0
    %882 = vdwg.mxu0
    %v883 = vadd.f32 %v600, %v875
    %v884 = vadd.f32 %v601, %v880
    %v885 = vadd.f32 %v185, %v883
    %v886 = vadd.f32 %v186, %v884
    %v887 = vsel %vm147, %v885, 0.0
    %888 = vadd.xlane.f32.xlu0 %v887
    %v889 = vpop.xlane.xlu0 %888
    %v890 = vsel %vm147, %v886, 0.0
    %891 = vadd.xlane.f32.xlu0 %v890
    %v892 = vpop.xlane.xlu0 %891
    %v893 = vmul.f32 %v889, %v154
    %v894 = vmul.f32 %v892, %v154
    %v895 = vsub.f32 %v885, %v893
    %v896 = vsub.f32 %v886, %v894
    %v897 = vmul.f32 %v895, %v895
    %v898 = vmul.f32 %v896, %v896
    %v899 = vsel %vm147, %v897, 0.0
    %900 = vadd.xlane.f32.xlu0 %v899
    %v901 = vpop.xlane.xlu0 %900
    %v902 = vsel %vm147, %v898, 0.0
    %903 = vadd.xlane.f32.xlu0 %v902
    %v904 = vpop.xlane.xlu0 %903
    %v905 = vmul.f32 %v901, %v154
    %v906 = vmul.f32 %v904, %v154
    %v907 = vadd.f32 %v905, 1e-12
    %v908 = vadd.f32 %v906, 1e-12
    %v909 = vrsqrt.pop %v907
    %v910 = vrsqrt.pop %v908
    %v911 = vmul.f32 %v895, %v909
    %v912 = vmul.f32 %v896, %v910
    %v913 = vlaneseq
    %v914 = vshrl.u32 %v913, 7
    %v915 = vsub.s32 2, %v914
    %v916 = vrot.slane %v222, %v915
    %v917 = vmul.f32 %v911, %v916
    %v918 = vmul.f32 %v912, %v916
    %v919 = vlaneseq
    %v920 = vshrl.u32 %v919, 7
    %v921 = vsub.s32 3, %v920
    %v922 = vrot.slane %v222, %v921
    %v923 = vadd.f32 %v917, %v922
    %v924 = vadd.f32 %v918, %v922
    %v925 = vld [vmem:[%s4] sm:$0xff]
    %v926 = vld [vmem:[%s4 + $0x8] sm:$0xff]
    %v927 = vld [vmem:[%s4 + $0x10] sm:$0xff]
    %v928 = vld [vmem:[%s4 + $0x18] sm:$0xff]
    %v929 = vlaneseq
    %v930 = vshrl.u32 %v929, 7
    %v931 = vsub.s32 4, %v930
    %v932 = vrot.slane %v222, %v931
    %v934 = vsel %vm147, %v923, 0
    %v937 = vsel %vm147, %v924, 0
    %939 = vmatprep.subr.mxu0 0.0
    %940 = vmatpush1.msra.mxu0 %v925
    %941 = vmatprep.subr.mxu0 0.0
    %942 = vmatpush1.msra.mxu0 %v926
    %943 = vmatprep.subr.mxu0 0.0
    %944 = vmatpush1.msra.mxu0 %v927
    %945 = vmatprep.subr.mxu0 0.0
    %946 = vmatpush1.msra.mxu0 %v928
    %947 = vmatprep.subr.mxu0 0.0
    %948 = vmatpush1.msra.mxu0 0.0
    %949 = vmatprep.subr.mxu0 0.0
    %950 = vmatpush1.msra.mxu0 0.0
    %951 = vmatprep.subr.mxu0 0.0
    %952 = vmatpush1.msra.mxu0 0.0
    %953 = vmatprep.subr.mxu0 0.0
    %954 = vmatpush1.msra.mxu0 0.0
    %955 = vmatprep.subr.mxu0 0.0
    %956 = vmatpush1.msra.mxu0 0.0
    %957 = vmatprep.subr.mxu0 0.0
    %958 = vmatpush1.msra.mxu0 0.0
    %959 = vmatprep.subr.mxu0 0.0
    %960 = vmatpush1.msra.mxu0 0.0
    %961 = vmatprep.subr.mxu0 0.0
    %962 = vmatpush1.msra.mxu0 0.0
    %963 = vmatprep.subr.mxu0 0.0
    %964 = vmatpush1.msra.mxu0 0.0
    %965 = vmatprep.subr.mxu0 0.0
    %966 = vmatpush1.msra.mxu0 0.0
    %967 = vmatprep.subr.mxu0 0.0
    %968 = vmatpush1.msra.mxu0 0.0
    %969 = vmatprep.subr.mxu0 0.0
    %970 = vmatpush1.msra.mxu0 0.0
    %971 = vmatprep.subr.mxu0 0.0
    %972 = vmatpush1.msra.mxu0 0.0
    %973 = vmatprep.subr.mxu0 0.0
    %974 = vmatpush1.msra.mxu0 0.0
    %975 = vmatprep.subr.mxu0 0.0
    %976 = vmatpush1.msra.mxu0 0.0
    %977 = vmatprep.subr.mxu0 0.0
    %978 = vmatpush1.msra.mxu0 0.0
    %979 = vmatprep.subr.mxu0 0.0
    %980 = vmatpush1.msra.mxu0 0.0
    %981 = vmatprep.subr.mxu0 0.0
    %982 = vmatpush1.msra.mxu0 0.0
    %983 = vmatprep.subr.mxu0 0.0
    %984 = vmatpush1.msra.mxu0 0.0
    %985 = vmatprep.subr.mxu0 0.0
    %986 = vmatpush1.msra.mxu0 0.0
    %987 = vmatprep.subr.mxu0 0.0
    %988 = vmatpush1.msra.mxu0 0.0
    %989 = vmatprep.subr.mxu0 0.0
    %990 = vmatpush1.msra.mxu0 0.0
    %991 = vmatprep.subr.mxu0 0.0
    %992 = vmatpush1.msra.mxu0 0.0
    %993 = vmatprep.subr.mxu0 0.0
    %994 = vmatpush1.msra.mxu0 0.0
    %995 = vmatprep.subr.mxu0 0.0
    %996 = vmatpush1.msra.mxu0 0.0
    %997 = vmatprep.subr.mxu0 0.0
    %998 = vmatpush1.msra.mxu0 0.0
    %999 = vmatprep.subr.mxu0 0.0
    %1000 = vmatpush1.msra.mxu0 0.0
    %1001 = vmatprep.subr.mxu0 0.0
    %1002 = vmatpush1.msra.mxu0 0.0
    %1003 = vmatprep.mubr.f32.mxu0 0.0
    %1004 = vmatmul.mubr.f32.gmra.mrb[0].mxu0 %v934
    %v1005 = vpop.f32.mrb[0].mxu0
    %v1006 = vadd.f32 %v932, %v1005
    %v1007 = vpop.f32.mrb[0].mxu0
    %1008 = vmatprep.mubr.f32.mxu0 0.0
    %1009 = vmatmul.mubr.f32.gmra.mrb[0].mxu0 %v937
    %v1010 = vpop.f32.mrb[0].mxu0
    %v1011 = vadd.f32 %v932, %v1010
    %v1012 = vpop.f32.mrb[0].mxu0
    %1013 = vdwg.mxu0
    %v1014 = vmul.f32 %v1006, %v1006
    %v1015 = vmul.f32 %v1011, %v1011
    %v1016 = vmul.f32 %v1006, %v1014
    %v1017 = vmul.f32 %v1011, %v1015
    %v1018 = vmul.f32 %v1016, 0.044715
    %v1019 = vmul.f32 %v1017, 0.044715
    %v1020 = vadd.f32 %v1006, %v1018
    %v1021 = vadd.f32 %v1011, %v1019
    %v1022 = vmul.f32 %v1020, 0.7978846
    %v1023 = vmul.f32 %v1021, 0.7978846
    %v1024 = vtanh.pop %v1022
    %v1025 = vtanh.pop %v1023
    %v1026 = vadd.f32 %v1024, 1.0
    %v1027 = vadd.f32 %v1025, 1.0
    %v1028 = vmul.f32 %v1026, 0.5
    %v1029 = vmul.f32 %v1027, 0.5
    %v1030 = vmul.f32 %v1006, %v1028
    %v1031 = vmul.f32 %v1011, %v1029
    %v1032 = vld [vmem:[%s5] sm:$0xff]
    %v1033 = vld [vmem:[%s5 + $0x8] sm:$0xff]
    %v1034 = vld [vmem:[%s5 + $0x10] sm:$0xff]
    %v1035 = vld [vmem:[%s5 + $0x18] sm:$0xff]
    %v1036 = vld [vmem:[%s5 + $0x20] sm:$0xff]
    %v1037 = vld [vmem:[%s5 + $0x28] sm:$0xff]
    %v1038 = vld [vmem:[%s5 + $0x30] sm:$0xff]
    %v1039 = vld [vmem:[%s5 + $0x38] sm:$0xff]
    %v1040 = vld [vmem:[%s5 + $0x40] sm:$0xff]
    %v1041 = vld [vmem:[%s5 + $0x48] sm:$0xff]
    %v1042 = vld [vmem:[%s5 + $0x50] sm:$0xff]
    %v1043 = vld [vmem:[%s5 + $0x58] sm:$0xff]
    %v1044 = vld [vmem:[%s5 + $0x60] sm:$0xff]
    %v1045 = vld [vmem:[%s5 + $0x68] sm:$0xff]
    %v1046 = vld [vmem:[%s5 + $0x70] sm:$0xff]
    %v1047 = vld [vmem:[%s5 + $0x78] sm:$0xff]
    %v1048 = vlaneseq
    %v1049 = vshrl.u32 %v1048, 7
    %v1050 = vsub.s32 5, %v1049
    %v1051 = vrot.slane %v222, %v1050
    %1052 = vmatprep.subr.mxu0 0.0
    %1053 = vmatpush1.msra.mxu0 %v1032
    %1054 = vmatprep.subr.mxu0 0.0
    %1055 = vmatpush1.msra.mxu0 %v1033
    %1056 = vmatprep.subr.mxu0 0.0
    %1057 = vmatpush1.msra.mxu0 %v1034
    %1058 = vmatprep.subr.mxu0 0.0
    %1059 = vmatpush1.msra.mxu0 %v1035
    %1060 = vmatprep.subr.mxu0 0.0
    %1061 = vmatpush1.msra.mxu0 %v1036
    %1062 = vmatprep.subr.mxu0 0.0
    %1063 = vmatpush1.msra.mxu0 %v1037
    %1064 = vmatprep.subr.mxu0 0.0
    %1065 = vmatpush1.msra.mxu0 %v1038
    %1066 = vmatprep.subr.mxu0 0.0
    %1067 = vmatpush1.msra.mxu0 %v1039
    %1068 = vmatprep.subr.mxu0 0.0
    %1069 = vmatpush1.msra.mxu0 %v1040
    %1070 = vmatprep.subr.mxu0 0.0
    %1071 = vmatpush1.msra.mxu0 %v1041
    %1072 = vmatprep.subr.mxu0 0.0
    %1073 = vmatpush1.msra.mxu0 %v1042
    %1074 = vmatprep.subr.mxu0 0.0
    %1075 = vmatpush1.msra.mxu0 %v1043
    %1076 = vmatprep.subr.mxu0 0.0
    %1077 = vmatpush1.msra.mxu0 %v1044
    %1078 = vmatprep.subr.mxu0 0.0
    %1079 = vmatpush1.msra.mxu0 %v1045
    %1080 = vmatprep.subr.mxu0 0.0
    %1081 = vmatpush1.msra.mxu0 %v1046
    %1082 = vmatprep.subr.mxu0 0.0
    %1083 = vmatpush1.msra.mxu0 %v1047
    %1084 = vmatprep.subr.mxu0 0.0
    %1085 = vmatpush1.msra.mxu0 0.0
    %1086 = vmatprep.subr.mxu0 0.0
    %1087 = vmatpush1.msra.mxu0 0.0
    %1088 = vmatprep.subr.mxu0 0.0
    %1089 = vmatpush1.msra.mxu0 0.0
    %1090 = vmatprep.subr.mxu0 0.0
    %1091 = vmatpush1.msra.mxu0 0.0
    %1092 = vmatprep.subr.mxu0 0.0
    %1093 = vmatpush1.msra.mxu0 0.0
    %1094 = vmatprep.subr.mxu0 0.0
    %1095 = vmatpush1.msra.mxu0 0.0
    %1096 = vmatprep.subr.mxu0 0.0
    %1097 = vmatpush1.msra.mxu0 0.0
    %1098 = vmatprep.subr.mxu0 0.0
    %1099 = vmatpush1.msra.mxu0 0.0
    %1100 = vmatprep.subr.mxu0 0.0
    %1101 = vmatpush1.msra.mxu0 0.0
    %1102 = vmatprep.subr.mxu0 0.0
    %1103 = vmatpush1.msra.mxu0 0.0
    %1104 = vmatprep.subr.mxu0 0.0
    %1105 = vmatpush1.msra.mxu0 0.0
    %1106 = vmatprep.subr.mxu0 0.0
    %1107 = vmatpush1.msra.mxu0 0.0
    %1108 = vmatprep.subr.mxu0 0.0
    %1109 = vmatpush1.msra.mxu0 0.0
    %1110 = vmatprep.subr.mxu0 0.0
    %1111 = vmatpush1.msra.mxu0 0.0
    %1112 = vmatprep.subr.mxu0 0.0
    %1113 = vmatpush1.msra.mxu0 0.0
    %1114 = vmatprep.subr.mxu0 0.0
    %1115 = vmatpush1.msra.mxu0 0.0
    %1116 = vmatprep.mubr.f32.mxu0 0.0
    %1117 = vmatmul.mubr.f32.gmra.mrb[0].mxu0 %v1030
    %v1118 = vpop.f32.mrb[0].mxu0
    %v1119 = vadd.f32 %v1051, %v1118
    %v1120 = vpop.f32.mrb[0].mxu0
    %1121 = vmatprep.mubr.f32.mxu0 0.0
    %1122 = vmatmul.mubr.f32.gmra.mrb[0].mxu0 %v1031
    %v1123 = vpop.f32.mrb[0].mxu0
    %v1124 = vadd.f32 %v1051, %v1123
    %v1125 = vpop.f32.mrb[0].mxu0
    %1126 = vdwg.mxu0
    %v1127 = vadd.f32 %v923, %v1119
    %v1128 = vadd.f32 %v924, %v1124
    %v1129 = vsel %vm147, %v1127, 0.0
    %1130 = vadd.xlane.f32.xlu0 %v1129
    %v1131 = vpop.xlane.xlu0 %1130
    %v1132 = vsel %vm147, %v1128, 0.0
    %1133 = vadd.xlane.f32.xlu0 %v1132
    %v1134 = vpop.xlane.xlu0 %1133
    %v1135 = vmul.f32 %v1131, %v154
    %v1136 = vmul.f32 %v1134, %v154
    %v1137 = vsub.f32 %v1127, %v1135
    %v1138 = vsub.f32 %v1128, %v1136
    %v1139 = vmul.f32 %v1137, %v1137
    %v1140 = vmul.f32 %v1138, %v1138
    %v1141 = vsel %vm147, %v1139, 0.0
    %1142 = vadd.xlane.f32.xlu0 %v1141
    %v1143 = vpop.xlane.xlu0 %1142
    %v1144 = vsel %vm147, %v1140, 0.0
    %1145 = vadd.xlane.f32.xlu0 %v1144
    %v1146 = vpop.xlane.xlu0 %1145
    %v1147 = vmul.f32 %v1143, %v154
    %v1148 = vmul.f32 %v1146, %v154
    %v1149 = vadd.f32 %v1147, 1e-12
    %v1150 = vadd.f32 %v1148, 1e-12
    %v1151 = vrsqrt.pop %v1149
    %v1152 = vrsqrt.pop %v1150
    %v1153 = vmul.f32 %v1137, %v1151
    %v1154 = vmul.f32 %v1138, %v1152
    %v1155 = vlaneseq
    %v1156 = vshrl.u32 %v1155, 7
    %v1157 = vsub.s32 6, %v1156
    %v1158 = vrot.slane %v222, %v1157
    %v1159 = vmul.f32 %v1153, %v1158
    %v1160 = vmul.f32 %v1154, %v1158
    %v1161 = vlaneseq
    %v1162 = vshrl.u32 %v1161, 7
    %v1163 = vsub.s32 7, %v1162
    %v1164 = vrot.slane %v222, %v1163
    %v1165 = vadd.f32 %v1159, %v1164
    %v1166 = vadd.f32 %v1160, %v1164
    %s1167 = scalar_lea.vmem %s6, 8
    %v1168 = vld [vmem:[%s1167] sm:$0xff]
    %s1169 = scalar_lea.vmem %s3, 32
    %v1170 = vld [vmem:[%s1169] sm:$0xff]
    %v1171 = vld [vmem:[%s1169 + $0x8] sm:$0xff]
    %v1172 = vld [vmem:[%s1169 + $0x10] sm:$0xff]
    %v1173 = vld [vmem:[%s1169 + $0x18] sm:$0xff]
    %s1174 = scalar_lea.vmem %s2, 32
    %v1175 = vld [vmem:[%s1174] sm:$0xff]
    %v1176 = vld [vmem:[%s1174 + $0x8] sm:$0xff]
    %v1177 = vld [vmem:[%s1174 + $0x10] sm:$0xff]
    %v1178 = vld [vmem:[%s1174 + $0x18] sm:$0xff]
    %v1179 = vlaneseq
    %v1180 = vshrl.u32 %v1179, 7
    %v1181 = vsub.s32 0, %v1180
    %v1182 = vrot.slane %v1168, %v1181
    %v1184 = vsel %vm147, %v1165, 0
    %v1187 = vsel %vm147, %v1166, 0
    %1189 = vmatprep.subr.mxu0 0.0
    %1190 = vmatpush1.msra.mxu0 %v1175
    %1191 = vmatprep.subr.mxu0 0.0
    %1192 = vmatpush1.msra.mxu0 %v1176
    %1193 = vmatprep.subr.mxu0 0.0
    %1194 = vmatpush1.msra.mxu0 %v1177
    %1195 = vmatprep.subr.mxu0 0.0
    %1196 = vmatpush1.msra.mxu0 %v1178
    %1197 = vmatprep.subr.mxu0 0.0
    %1198 = vmatpush1.msra.mxu0 0.0
    %1199 = vmatprep.subr.mxu0 0.0
    %1200 = vmatpush1.msra.mxu0 0.0
    %1201 = vmatprep.subr.mxu0 0.0
    %1202 = vmatpush1.msra.mxu0 0.0
    %1203 = vmatprep.subr.mxu0 0.0
    %1204 = vmatpush1.msra.mxu0 0.0
    %1205 = vmatprep.subr.mxu0 0.0
    %1206 = vmatpush1.msra.mxu0 0.0
    %1207 = vmatprep.subr.mxu0 0.0
    %1208 = vmatpush1.msra.mxu0 0.0
    %1209 = vmatprep.subr.mxu0 0.0
    %1210 = vmatpush1.msra.mxu0 0.0
    %1211 = vmatprep.subr.mxu0 0.0
    %1212 = vmatpush1.msra.mxu0 0.0
    %1213 = vmatprep.subr.mxu0 0.0
    %1214 = vmatpush1.msra.mxu0 0.0
    %1215 = vmatprep.subr.mxu0 0.0
    %1216 = vmatpush1.msra.mxu0 0.0
    %1217 = vmatprep.subr.mxu0 0.0
    %1218 = vmatpush1.msra.mxu0 0.0
    %1219 = vmatprep.subr.mxu0 0.0
    %1220 = vmatpush1.msra.mxu0 0.0
    %1221 = vmatprep.subr.mxu0 0.0
    %1222 = vmatpush1.msra.mxu0 0.0
    %1223 = vmatprep.subr.mxu0 0.0
    %1224 = vmatpush1.msra.mxu0 0.0
    %1225 = vmatprep.subr.mxu0 0.0
    %1226 = vmatpush1.msra.mxu0 0.0
    %1227 = vmatprep.subr.mxu0 0.0
    %1228 = vmatpush1.msra.mxu0 0.0
    %1229 = vmatprep.subr.mxu0 0.0
    %1230 = vmatpush1.msra.mxu0 0.0
    %1231 = vmatprep.subr.mxu0 0.0
    %1232 = vmatpush1.msra.mxu0 0.0
    %1233 = vmatprep.subr.mxu0 0.0
    %1234 = vmatpush1.msra.mxu0 0.0
    %1235 = vmatprep.subr.mxu0 0.0
    %1236 = vmatpush1.msra.mxu0 0.0
    %1237 = vmatprep.subr.mxu0 0.0
    %1238 = vmatpush1.msra.mxu0 0.0
    %1239 = vmatprep.subr.mxu0 0.0
    %1240 = vmatpush1.msra.mxu0 0.0
    %1241 = vmatprep.subr.mxu0 0.0
    %1242 = vmatpush1.msra.mxu0 0.0
    %1243 = vmatprep.subr.mxu0 0.0
    %1244 = vmatpush1.msra.mxu0 0.0
    %1245 = vmatprep.subr.mxu0 0.0
    %1246 = vmatpush1.msra.mxu0 0.0
    %1247 = vmatprep.subr.mxu0 0.0
    %1248 = vmatpush1.msra.mxu0 0.0
    %1249 = vmatprep.subr.mxu0 0.0
    %1250 = vmatpush1.msra.mxu0 0.0
    %1251 = vmatprep.subr.mxu0 0.0
    %1252 = vmatpush1.msra.mxu0 0.0
    %1253 = vmatprep.mubr.f32.mxu0 0.0
    %1254 = vmatmul.mubr.f32.gmra.mrb[0].mxu0 %v1184
    %v1255 = vpop.f32.mrb[0].mxu0
    %v1256 = vadd.f32 %v1182, %v1255
    %v1257 = vpop.f32.mrb[0].mxu0
    %1258 = vmatprep.mubr.f32.mxu0 0.0
    %1259 = vmatmul.mubr.f32.gmra.mrb[0].mxu0 %v1187
    %v1260 = vpop.f32.mrb[0].mxu0
    %v1261 = vadd.f32 %v1182, %v1260
    %v1262 = vpop.f32.mrb[0].mxu0
    %1263 = vdwg.mxu0
    %1266 = vrot.lane.b32.xlu0 %v1256, 96
    %v1267 = vpop.permute.xlu0 %1266
    %1268 = vrot.lane.b32.xlu0 %v1261, 96
    %v1269 = vpop.permute.xlu0 %1268
    %v1270 = vsel %vm322, %v1256, 0
    %v1272 = vsel %vm322, %v1261, 0
    %v1274 = vsel %vm322, %v1267, 0
    %v1276 = vsel %vm322, %v1269, 0
    %1278 = vmatprep.subr.mxu0 0.0
    %1279 = vmatpush1.xpose.msra.mxu0 %v1274
    %1280 = vmatprep.subr.mxu0 0.0
    %1281 = vmatpush1.xpose.msra.mxu0 %v1276
    %1282 = vmatprep.subr.mxu0 0.0
    %1283 = vmatpush1.xpose.msra.mxu0 0.0
    %1284 = vmatprep.subr.mxu0 0.0
    %1285 = vmatpush1.xpose.msra.mxu0 0.0
    %1286 = vmatprep.subr.mxu0 0.0
    %1287 = vmatpush1.xpose.msra.mxu0 0.0
    %1288 = vmatprep.subr.mxu0 0.0
    %1289 = vmatpush1.xpose.msra.mxu0 0.0
    %1290 = vmatprep.subr.mxu0 0.0
    %1291 = vmatpush1.xpose.msra.mxu0 0.0
    %1292 = vmatprep.subr.mxu0 0.0
    %1293 = vmatpush1.xpose.msra.mxu0 0.0
    %1294 = vmatprep.subr.mxu0 0.0
    %1295 = vmatpush1.xpose.msra.mxu0 0.0
    %1296 = vmatprep.subr.mxu0 0.0
    %1297 = vmatpush1.xpose.msra.mxu0 0.0
    %1298 = vmatprep.subr.mxu0 0.0
    %1299 = vmatpush1.xpose.msra.mxu0 0.0
    %1300 = vmatprep.subr.mxu0 0.0
    %1301 = vmatpush1.xpose.msra.mxu0 0.0
    %1302 = vmatprep.subr.mxu0 0.0
    %1303 = vmatpush1.xpose.msra.mxu0 0.0
    %1304 = vmatprep.subr.mxu0 0.0
    %1305 = vmatpush1.xpose.msra.mxu0 0.0
    %1306 = vmatprep.subr.mxu0 0.0
    %1307 = vmatpush1.xpose.msra.mxu0 0.0
    %1308 = vmatprep.subr.mxu0 0.0
    %1309 = vmatpush1.xpose.msra.mxu0 0.0
    %1310 = vmatprep.subr.mxu0 0.0
    %1311 = vmatpush1.xpose.msra.mxu0 0.0
    %1312 = vmatprep.subr.mxu0 0.0
    %1313 = vmatpush1.xpose.msra.mxu0 0.0
    %1314 = vmatprep.subr.mxu0 0.0
    %1315 = vmatpush1.xpose.msra.mxu0 0.0
    %1316 = vmatprep.subr.mxu0 0.0
    %1317 = vmatpush1.xpose.msra.mxu0 0.0
    %1318 = vmatprep.subr.mxu0 0.0
    %1319 = vmatpush1.xpose.msra.mxu0 0.0
    %1320 = vmatprep.subr.mxu0 0.0
    %1321 = vmatpush1.xpose.msra.mxu0 0.0
    %1322 = vmatprep.subr.mxu0 0.0
    %1323 = vmatpush1.xpose.msra.mxu0 0.0
    %1324 = vmatprep.subr.mxu0 0.0
    %1325 = vmatpush1.xpose.msra.mxu0 0.0
    %1326 = vmatprep.subr.mxu0 0.0
    %1327 = vmatpush1.xpose.msra.mxu0 0.0
    %1328 = vmatprep.subr.mxu0 0.0
    %1329 = vmatpush1.xpose.msra.mxu0 0.0
    %1330 = vmatprep.subr.mxu0 0.0
    %1331 = vmatpush1.xpose.msra.mxu0 0.0
    %1332 = vmatprep.subr.mxu0 0.0
    %1333 = vmatpush1.xpose.msra.mxu0 0.0
    %1334 = vmatprep.subr.mxu0 0.0
    %1335 = vmatpush1.xpose.msra.mxu0 0.0
    %1336 = vmatprep.subr.mxu0 0.0
    %1337 = vmatpush1.xpose.msra.mxu0 0.0
    %1338 = vmatprep.subr.mxu0 0.0
    %1339 = vmatpush1.xpose.msra.mxu0 0.0
    %1340 = vmatprep.subr.mxu0 0.0
    %1341 = vmatpush1.xpose.msra.mxu0 0.0
    %1342 = vmatprep.mubr.f32.mxu0 0.0
    %1343 = vmatmul.mubr.f32.gmra.mrb[0].mxu0 %v1270
    %v1344 = vpop.f32.mrb[0].mxu0
    %v1345 = vadd.f32 %v220, %v1344
    %v1346 = vpop.f32.mrb[0].mxu0
    %1347 = vmatprep.mubr.f32.mxu0 0.0
    %1348 = vmatmul.mubr.f32.gmra.mrb[0].mxu0 %v1272
    %v1349 = vpop.f32.mrb[0].mxu0
    %v1350 = vadd.f32 %v221, %v1349
    %v1351 = vpop.f32.mrb[0].mxu0
    %1352 = vdwg.mxu0
    %v1353 = vsel %vm322, %v1345, -inf
    %1354 = vmax.xlane.f32.xlu0 %v1353
    %v1355 = vpop.xlane.xlu0 %1354
    %v1356 = vsel %vm322, %v1350, -inf
    %1357 = vmax.xlane.f32.xlu0 %v1356
    %v1358 = vpop.xlane.xlu0 %1357
    %v1359 = vsub.f32 %v1345, %v1355
    %v1360 = vsub.f32 %v1350, %v1358
    %v1361 = vmul.f32 %v1359, 1.442695
    %v1362 = vpow.pop %v1361
    %v1363 = vmul.f32 %v1360, 1.442695
    %v1364 = vpow.pop %v1363
    %v1365 = vsel %vm322, %v1362, 0.0
    %1366 = vadd.xlane.f32.xlu0 %v1365
    %v1367 = vpop.xlane.xlu0 %1366
    %v1368 = vsel %vm322, %v1364, 0.0
    %1369 = vadd.xlane.f32.xlu0 %v1368
    %v1370 = vpop.xlane.xlu0 %1369
    %v1371 = vrcp.pop %v1367
    %v1372 = vrcp.pop %v1370
    %v1373 = vmul.f32 %v1362, %v1371
    %v1374 = vmul.f32 %v1364, %v1372
    %1375 = vrot.lane.b32.xlu0 %v1256, 64
    %v1376 = vpop.permute.xlu0 %1375
    %1377 = vrot.lane.b32.xlu0 %v1261, 64
    %v1378 = vpop.permute.xlu0 %1377
    %v1382 = vsel %vm322, %v1373, 0
    %v1385 = vsel %vm322, %v1374, 0
    %1387 = vmatprep.subr.mxu0 0.0
    %1388 = vmatpush1.msra.mxu0 %v1376
    %1389 = vmatprep.subr.mxu0 0.0
    %1390 = vmatpush1.msra.mxu0 %v1378
    %1391 = vmatprep.subr.mxu0 0.0
    %1392 = vmatpush1.msra.mxu0 0.0
    %1393 = vmatprep.subr.mxu0 0.0
    %1394 = vmatpush1.msra.mxu0 0.0
    %1395 = vmatprep.subr.mxu0 0.0
    %1396 = vmatpush1.msra.mxu0 0.0
    %1397 = vmatprep.subr.mxu0 0.0
    %1398 = vmatpush1.msra.mxu0 0.0
    %1399 = vmatprep.subr.mxu0 0.0
    %1400 = vmatpush1.msra.mxu0 0.0
    %1401 = vmatprep.subr.mxu0 0.0
    %1402 = vmatpush1.msra.mxu0 0.0
    %1403 = vmatprep.subr.mxu0 0.0
    %1404 = vmatpush1.msra.mxu0 0.0
    %1405 = vmatprep.subr.mxu0 0.0
    %1406 = vmatpush1.msra.mxu0 0.0
    %1407 = vmatprep.subr.mxu0 0.0
    %1408 = vmatpush1.msra.mxu0 0.0
    %1409 = vmatprep.subr.mxu0 0.0
    %1410 = vmatpush1.msra.mxu0 0.0
    %1411 = vmatprep.subr.mxu0 0.0
    %1412 = vmatpush1.msra.mxu0 0.0
    %1413 = vmatprep.subr.mxu0 0.0
    %1414 = vmatpush1.msra.mxu0 0.0
    %1415 = vmatprep.subr.mxu0 0.0
    %1416 = vmatpush1.msra.mxu0 0.0
    %1417 = vmatprep.subr.mxu0 0.0
    %1418 = vmatpush1.msra.mxu0 0.0
    %1419 = vmatprep.subr.mxu0 0.0
    %1420 = vmatpush1.msra.mxu0 0.0
    %1421 = vmatprep.subr.mxu0 0.0
    %1422 = vmatpush1.msra.mxu0 0.0
    %1423 = vmatprep.subr.mxu0 0.0
    %1424 = vmatpush1.msra.mxu0 0.0
    %1425 = vmatprep.subr.mxu0 0.0
    %1426 = vmatpush1.msra.mxu0 0.0
    %1427 = vmatprep.subr.mxu0 0.0
    %1428 = vmatpush1.msra.mxu0 0.0
    %1429 = vmatprep.subr.mxu0 0.0
    %1430 = vmatpush1.msra.mxu0 0.0
    %1431 = vmatprep.subr.mxu0 0.0
    %1432 = vmatpush1.msra.mxu0 0.0
    %1433 = vmatprep.subr.mxu0 0.0
    %1434 = vmatpush1.msra.mxu0 0.0
    %1435 = vmatprep.subr.mxu0 0.0
    %1436 = vmatpush1.msra.mxu0 0.0
    %1437 = vmatprep.subr.mxu0 0.0
    %1438 = vmatpush1.msra.mxu0 0.0
    %1439 = vmatprep.subr.mxu0 0.0
    %1440 = vmatpush1.msra.mxu0 0.0
    %1441 = vmatprep.subr.mxu0 0.0
    %1442 = vmatpush1.msra.mxu0 0.0
    %1443 = vmatprep.subr.mxu0 0.0
    %1444 = vmatpush1.msra.mxu0 0.0
    %1445 = vmatprep.subr.mxu0 0.0
    %1446 = vmatpush1.msra.mxu0 0.0
    %1447 = vmatprep.subr.mxu0 0.0
    %1448 = vmatpush1.msra.mxu0 0.0
    %1449 = vmatprep.subr.mxu0 0.0
    %1450 = vmatpush1.msra.mxu0 0.0
    %1451 = vmatprep.mubr.f32.mxu0 0.0
    %1452 = vmatmul.mubr.f32.gmra.mrb[0].mxu0 %v1382
    %v1453 = vpop.f32.mrb[0].mxu0
    %v1454 = vadd.f32 0.0, %v1453
    %v1455 = vpop.f32.mrb[0].mxu0
    %1456 = vmatprep.mubr.f32.mxu0 0.0
    %1457 = vmatmul.mubr.f32.gmra.mrb[0].mxu0 %v1385
    %v1458 = vpop.f32.mrb[0].mxu0
    %v1459 = vadd.f32 0.0, %v1458
    %v1460 = vpop.f32.mrb[0].mxu0
    %1461 = vdwg.mxu0
    %v1463 = vsel %vm322, %v1454, 0
    %v1466 = vsel %vm322, %v1459, 0
    %1468 = vmatprep.subr.mxu0 0.0
    %1469 = vmatpush1.msra.mxu0 %v1170
    %1470 = vmatprep.subr.mxu0 0.0
    %1471 = vmatpush1.msra.mxu0 %v1171
    %1472 = vmatprep.subr.mxu0 0.0
    %1473 = vmatpush1.msra.mxu0 0.0
    %1474 = vmatprep.subr.mxu0 0.0
    %1475 = vmatpush1.msra.mxu0 0.0
    %1476 = vmatprep.subr.mxu0 0.0
    %1477 = vmatpush1.msra.mxu0 0.0
    %1478 = vmatprep.subr.mxu0 0.0
    %1479 = vmatpush1.msra.mxu0 0.0
    %1480 = vmatprep.subr.mxu0 0.0
    %1481 = vmatpush1.msra.mxu0 0.0
    %1482 = vmatprep.subr.mxu0 0.0
    %1483 = vmatpush1.msra.mxu0 0.0
    %1484 = vmatprep.subr.mxu0 0.0
    %1485 = vmatpush1.msra.mxu0 0.0
    %1486 = vmatprep.subr.mxu0 0.0
    %1487 = vmatpush1.msra.mxu0 0.0
    %1488 = vmatprep.subr.mxu0 0.0
    %1489 = vmatpush1.msra.mxu0 0.0
    %1490 = vmatprep.subr.mxu0 0.0
    %1491 = vmatpush1.msra.mxu0 0.0
    %1492 = vmatprep.subr.mxu0 0.0
    %1493 = vmatpush1.msra.mxu0 0.0
    %1494 = vmatprep.subr.mxu0 0.0
    %1495 = vmatpush1.msra.mxu0 0.0
    %1496 = vmatprep.subr.mxu0 0.0
    %1497 = vmatpush1.msra.mxu0 0.0
    %1498 = vmatprep.subr.mxu0 0.0
    %1499 = vmatpush1.msra.mxu0 0.0
    %1500 = vmatprep.subr.mxu0 0.0
    %1501 = vmatpush1.msra.mxu0 0.0
    %1502 = vmatprep.subr.mxu0 0.0
    %1503 = vmatpush1.msra.mxu0 0.0
    %1504 = vmatprep.subr.mxu0 0.0
    %1505 = vmatpush1.msra.mxu0 0.0
    %1506 = vmatprep.subr.mxu0 0.0
    %1507 = vmatpush1.msra.mxu0 0.0
    %1508 = vmatprep.subr.mxu0 0.0
    %1509 = vmatpush1.msra.mxu0 0.0
    %1510 = vmatprep.subr.mxu0 0.0
    %1511 = vmatpush1.msra.mxu0 0.0
    %1512 = vmatprep.subr.mxu0 0.0
    %1513 = vmatpush1.msra.mxu0 0.0
    %1514 = vmatprep.subr.mxu0 0.0
    %1515 = vmatpush1.msra.mxu0 0.0
    %1516 = vmatprep.subr.mxu0 0.0
    %1517 = vmatpush1.msra.mxu0 0.0
    %1518 = vmatprep.subr.mxu0 0.0
    %1519 = vmatpush1.msra.mxu0 0.0
    %1520 = vmatprep.subr.mxu0 0.0
    %1521 = vmatpush1.msra.mxu0 0.0
    %1522 = vmatprep.subr.mxu0 0.0
    %1523 = vmatpush1.msra.mxu0 0.0
    %1524 = vmatprep.subr.mxu0 0.0
    %1525 = vmatpush1.msra.mxu0 0.0
    %1526 = vmatprep.subr.mxu0 0.0
    %1527 = vmatpush1.msra.mxu0 0.0
    %1528 = vmatprep.subr.mxu0 0.0
    %1529 = vmatpush1.msra.mxu0 0.0
    %1530 = vmatprep.subr.mxu0 0.0
    %1531 = vmatpush1.msra.mxu0 0.0
    %1532 = vmatprep.mubr.f32.mxu0 0.0
    %1533 = vmatmul.mubr.f32.gmra.mrb[0].mxu0 %v1463
    %v1534 = vpop.f32.mrb[0].mxu0
    %v1535 = vadd.f32 0.0, %v1534
    %v1536 = vpop.f32.mrb[0].mxu0
    %1537 = vmatprep.mubr.f32.mxu0 0.0
    %1538 = vmatmul.mubr.f32.gmra.mrb[0].mxu0 %v1466
    %v1539 = vpop.f32.mrb[0].mxu0
    %v1540 = vadd.f32 0.0, %v1539
    %v1541 = vpop.f32.mrb[0].mxu0
    %1542 = vdwg.mxu0
    %v1543 = vlaneseq
    %v1544 = vshrl.u32 %v1543, 7
    %v1545 = vsub.s32 1, %v1544
    %v1546 = vrot.slane %v1168, %v1545
    %v1547 = vadd.f32 %v1546, %v1535
    %v1548 = vadd.f32 %v1546, %v1540
    %1549 = vrot.lane.b32.xlu0 %v1256, 112
    %v1550 = vpop.permute.xlu0 %1549
    %1551 = vrot.lane.b32.xlu0 %v1261, 112
    %v1552 = vpop.permute.xlu0 %1551
    %1553 = vrot.lane.b32.xlu0 %v1256, 80
    %v1554 = vpop.permute.xlu0 %1553
    %1555 = vrot.lane.b32.xlu0 %v1261, 80
    %v1556 = vpop.permute.xlu0 %1555
    %v1557 = vsel %vm322, %v1550, 0
    %v1559 = vsel %vm322, %v1552, 0
    %v1561 = vsel %vm322, %v1554, 0
    %v1563 = vsel %vm322, %v1556, 0
    %1565 = vmatprep.subr.mxu0 0.0
    %1566 = vmatpush1.xpose.msra.mxu0 %v1561
    %1567 = vmatprep.subr.mxu0 0.0
    %1568 = vmatpush1.xpose.msra.mxu0 %v1563
    %1569 = vmatprep.subr.mxu0 0.0
    %1570 = vmatpush1.xpose.msra.mxu0 0.0
    %1571 = vmatprep.subr.mxu0 0.0
    %1572 = vmatpush1.xpose.msra.mxu0 0.0
    %1573 = vmatprep.subr.mxu0 0.0
    %1574 = vmatpush1.xpose.msra.mxu0 0.0
    %1575 = vmatprep.subr.mxu0 0.0
    %1576 = vmatpush1.xpose.msra.mxu0 0.0
    %1577 = vmatprep.subr.mxu0 0.0
    %1578 = vmatpush1.xpose.msra.mxu0 0.0
    %1579 = vmatprep.subr.mxu0 0.0
    %1580 = vmatpush1.xpose.msra.mxu0 0.0
    %1581 = vmatprep.subr.mxu0 0.0
    %1582 = vmatpush1.xpose.msra.mxu0 0.0
    %1583 = vmatprep.subr.mxu0 0.0
    %1584 = vmatpush1.xpose.msra.mxu0 0.0
    %1585 = vmatprep.subr.mxu0 0.0
    %1586 = vmatpush1.xpose.msra.mxu0 0.0
    %1587 = vmatprep.subr.mxu0 0.0
    %1588 = vmatpush1.xpose.msra.mxu0 0.0
    %1589 = vmatprep.subr.mxu0 0.0
    %1590 = vmatpush1.xpose.msra.mxu0 0.0
    %1591 = vmatprep.subr.mxu0 0.0
    %1592 = vmatpush1.xpose.msra.mxu0 0.0
    %1593 = vmatprep.subr.mxu0 0.0
    %1594 = vmatpush1.xpose.msra.mxu0 0.0
    %1595 = vmatprep.subr.mxu0 0.0
    %1596 = vmatpush1.xpose.msra.mxu0 0.0
    %1597 = vmatprep.subr.mxu0 0.0
    %1598 = vmatpush1.xpose.msra.mxu0 0.0
    %1599 = vmatprep.subr.mxu0 0.0
    %1600 = vmatpush1.xpose.msra.mxu0 0.0
    %1601 = vmatprep.subr.mxu0 0.0
    %1602 = vmatpush1.xpose.msra.mxu0 0.0
    %1603 = vmatprep.subr.mxu0 0.0
    %1604 = vmatpush1.xpose.msra.mxu0 0.0
    %1605 = vmatprep.subr.mxu0 0.0
    %1606 = vmatpush1.xpose.msra.mxu0 0.0
    %1607 = vmatprep.subr.mxu0 0.0
    %1608 = vmatpush1.xpose.msra.mxu0 0.0
    %1609 = vmatprep.subr.mxu0 0.0
    %1610 = vmatpush1.xpose.msra.mxu0 0.0
    %1611 = vmatprep.subr.mxu0 0.0
    %1612 = vmatpush1.xpose.msra.mxu0 0.0
    %1613 = vmatprep.subr.mxu0 0.0
    %1614 = vmatpush1.xpose.msra.mxu0 0.0
    %1615 = vmatprep.subr.mxu0 0.0
    %1616 = vmatpush1.xpose.msra.mxu0 0.0
    %1617 = vmatprep.subr.mxu0 0.0
    %1618 = vmatpush1.xpose.msra.mxu0 0.0
    %1619 = vmatprep.subr.mxu0 0.0
    %1620 = vmatpush1.xpose.msra.mxu0 0.0
    %1621 = vmatprep.subr.mxu0 0.0
    %1622 = vmatpush1.xpose.msra.mxu0 0.0
    %1623 = vmatprep.subr.mxu0 0.0
    %1624 = vmatpush1.xpose.msra.mxu0 0.0
    %1625 = vmatprep.subr.mxu0 0.0
    %1626 = vmatpush1.xpose.msra.mxu0 0.0
    %1627 = vmatprep.subr.mxu0 0.0
    %1628 = vmatpush1.xpose.msra.mxu0 0.0
    %1629 = vmatprep.mubr.f32.mxu0 0.0
    %1630 = vmatmul.mubr.f32.gmra.mrb[0].mxu0 %v1557
    %v1631 = vpop.f32.mrb[0].mxu0
    %v1632 = vadd.f32 %v220, %v1631
    %v1633 = vpop.f32.mrb[0].mxu0
    %1634 = vmatprep.mubr.f32.mxu0 0.0
    %1635 = vmatmul.mubr.f32.gmra.mrb[0].mxu0 %v1559
    %v1636 = vpop.f32.mrb[0].mxu0
    %v1637 = vadd.f32 %v221, %v1636
    %v1638 = vpop.f32.mrb[0].mxu0
    %1639 = vdwg.mxu0
    %v1640 = vsel %vm322, %v1632, -inf
    %1641 = vmax.xlane.f32.xlu0 %v1640
    %v1642 = vpop.xlane.xlu0 %1641
    %v1643 = vsel %vm322, %v1637, -inf
    %1644 = vmax.xlane.f32.xlu0 %v1643
    %v1645 = vpop.xlane.xlu0 %1644
    %v1646 = vsub.f32 %v1632, %v1642
    %v1647 = vsub.f32 %v1637, %v1645
    %v1648 = vmul.f32 %v1646, 1.442695
    %v1649 = vpow.pop %v1648
    %v1650 = vmul.f32 %v1647, 1.442695
    %v1651 = vpow.pop %v1650
    %v1652 = vsel %vm322, %v1649, 0.0
    %1653 = vadd.xlane.f32.xlu0 %v1652
    %v1654 = vpop.xlane.xlu0 %1653
    %v1655 = vsel %vm322, %v1651, 0.0
    %1656 = vadd.xlane.f32.xlu0 %v1655
    %v1657 = vpop.xlane.xlu0 %1656
    %v1658 = vrcp.pop %v1654
    %v1659 = vrcp.pop %v1657
    %v1660 = vmul.f32 %v1649, %v1658
    %v1661 = vmul.f32 %v1651, %v1659
    %1662 = vrot.lane.b32.xlu0 %v1256, 48
    %v1663 = vpop.permute.xlu0 %1662
    %1664 = vrot.lane.b32.xlu0 %v1261, 48
    %v1665 = vpop.permute.xlu0 %1664
    %v1669 = vsel %vm322, %v1660, 0
    %v1672 = vsel %vm322, %v1661, 0
    %1674 = vmatprep.subr.mxu0 0.0
    %1675 = vmatpush1.msra.mxu0 %v1663
    %1676 = vmatprep.subr.mxu0 0.0
    %1677 = vmatpush1.msra.mxu0 %v1665
    %1678 = vmatprep.subr.mxu0 0.0
    %1679 = vmatpush1.msra.mxu0 0.0
    %1680 = vmatprep.subr.mxu0 0.0
    %1681 = vmatpush1.msra.mxu0 0.0
    %1682 = vmatprep.subr.mxu0 0.0
    %1683 = vmatpush1.msra.mxu0 0.0
    %1684 = vmatprep.subr.mxu0 0.0
    %1685 = vmatpush1.msra.mxu0 0.0
    %1686 = vmatprep.subr.mxu0 0.0
    %1687 = vmatpush1.msra.mxu0 0.0
    %1688 = vmatprep.subr.mxu0 0.0
    %1689 = vmatpush1.msra.mxu0 0.0
    %1690 = vmatprep.subr.mxu0 0.0
    %1691 = vmatpush1.msra.mxu0 0.0
    %1692 = vmatprep.subr.mxu0 0.0
    %1693 = vmatpush1.msra.mxu0 0.0
    %1694 = vmatprep.subr.mxu0 0.0
    %1695 = vmatpush1.msra.mxu0 0.0
    %1696 = vmatprep.subr.mxu0 0.0
    %1697 = vmatpush1.msra.mxu0 0.0
    %1698 = vmatprep.subr.mxu0 0.0
    %1699 = vmatpush1.msra.mxu0 0.0
    %1700 = vmatprep.subr.mxu0 0.0
    %1701 = vmatpush1.msra.mxu0 0.0
    %1702 = vmatprep.subr.mxu0 0.0
    %1703 = vmatpush1.msra.mxu0 0.0
    %1704 = vmatprep.subr.mxu0 0.0
    %1705 = vmatpush1.msra.mxu0 0.0
    %1706 = vmatprep.subr.mxu0 0.0
    %1707 = vmatpush1.msra.mxu0 0.0
    %1708 = vmatprep.subr.mxu0 0.0
    %1709 = vmatpush1.msra.mxu0 0.0
    %1710 = vmatprep.subr.mxu0 0.0
    %1711 = vmatpush1.msra.mxu0 0.0
    %1712 = vmatprep.subr.mxu0 0.0
    %1713 = vmatpush1.msra.mxu0 0.0
    %1714 = vmatprep.subr.mxu0 0.0
    %1715 = vmatpush1.msra.mxu0 0.0
    %1716 = vmatprep.subr.mxu0 0.0
    %1717 = vmatpush1.msra.mxu0 0.0
    %1718 = vmatprep.subr.mxu0 0.0
    %1719 = vmatpush1.msra.mxu0 0.0
    %1720 = vmatprep.subr.mxu0 0.0
    %1721 = vmatpush1.msra.mxu0 0.0
    %1722 = vmatprep.subr.mxu0 0.0
    %1723 = vmatpush1.msra.mxu0 0.0
    %1724 = vmatprep.subr.mxu0 0.0
    %1725 = vmatpush1.msra.mxu0 0.0
    %1726 = vmatprep.subr.mxu0 0.0
    %1727 = vmatpush1.msra.mxu0 0.0
    %1728 = vmatprep.subr.mxu0 0.0
    %1729 = vmatpush1.msra.mxu0 0.0
    %1730 = vmatprep.subr.mxu0 0.0
    %1731 = vmatpush1.msra.mxu0 0.0
    %1732 = vmatprep.subr.mxu0 0.0
    %1733 = vmatpush1.msra.mxu0 0.0
    %1734 = vmatprep.subr.mxu0 0.0
    %1735 = vmatpush1.msra.mxu0 0.0
    %1736 = vmatprep.subr.mxu0 0.0
    %1737 = vmatpush1.msra.mxu0 0.0
    %1738 = vmatprep.mubr.f32.mxu0 0.0
    %1739 = vmatmul.mubr.f32.gmra.mrb[0].mxu0 %v1669
    %v1740 = vpop.f32.mrb[0].mxu0
    %v1741 = vadd.f32 0.0, %v1740
    %v1742 = vpop.f32.mrb[0].mxu0
    %1743 = vmatprep.mubr.f32.mxu0 0.0
    %1744 = vmatmul.mubr.f32.gmra.mrb[0].mxu0 %v1672
    %v1745 = vpop.f32.mrb[0].mxu0
    %v1746 = vadd.f32 0.0, %v1745
    %v1747 = vpop.f32.mrb[0].mxu0
    %1748 = vdwg.mxu0
    %v1750 = vsel %vm322, %v1741, 0
    %v1753 = vsel %vm322, %v1746, 0
    %1755 = vmatprep.subr.mxu0 0.0
    %1756 = vmatpush1.msra.mxu0 %v1172
    %1757 = vmatprep.subr.mxu0 0.0
    %1758 = vmatpush1.msra.mxu0 %v1173
    %1759 = vmatprep.subr.mxu0 0.0
    %1760 = vmatpush1.msra.mxu0 0.0
    %1761 = vmatprep.subr.mxu0 0.0
    %1762 = vmatpush1.msra.mxu0 0.0
    %1763 = vmatprep.subr.mxu0 0.0
    %1764 = vmatpush1.msra.mxu0 0.0
    %1765 = vmatprep.subr.mxu0 0.0
    %1766 = vmatpush1.msra.mxu0 0.0
    %1767 = vmatprep.subr.mxu0 0.0
    %1768 = vmatpush1.msra.mxu0 0.0
    %1769 = vmatprep.subr.mxu0 0.0
    %1770 = vmatpush1.msra.mxu0 0.0
    %1771 = vmatprep.subr.mxu0 0.0
    %1772 = vmatpush1.msra.mxu0 0.0
    %1773 = vmatprep.subr.mxu0 0.0
    %1774 = vmatpush1.msra.mxu0 0.0
    %1775 = vmatprep.subr.mxu0 0.0
    %1776 = vmatpush1.msra.mxu0 0.0
    %1777 = vmatprep.subr.mxu0 0.0
    %1778 = vmatpush1.msra.mxu0 0.0
    %1779 = vmatprep.subr.mxu0 0.0
    %1780 = vmatpush1.msra.mxu0 0.0
    %1781 = vmatprep.subr.mxu0 0.0
    %1782 = vmatpush1.msra.mxu0 0.0
    %1783 = vmatprep.subr.mxu0 0.0
    %1784 = vmatpush1.msra.mxu0 0.0
    %1785 = vmatprep.subr.mxu0 0.0
    %1786 = vmatpush1.msra.mxu0 0.0
    %1787 = vmatprep.subr.mxu0 0.0
    %1788 = vmatpush1.msra.mxu0 0.0
    %1789 = vmatprep.subr.mxu0 0.0
    %1790 = vmatpush1.msra.mxu0 0.0
    %1791 = vmatprep.subr.mxu0 0.0
    %1792 = vmatpush1.msra.mxu0 0.0
    %1793 = vmatprep.subr.mxu0 0.0
    %1794 = vmatpush1.msra.mxu0 0.0
    %1795 = vmatprep.subr.mxu0 0.0
    %1796 = vmatpush1.msra.mxu0 0.0
    %1797 = vmatprep.subr.mxu0 0.0
    %1798 = vmatpush1.msra.mxu0 0.0
    %1799 = vmatprep.subr.mxu0 0.0
    %1800 = vmatpush1.msra.mxu0 0.0
    %1801 = vmatprep.subr.mxu0 0.0
    %1802 = vmatpush1.msra.mxu0 0.0
    %1803 = vmatprep.subr.mxu0 0.0
    %1804 = vmatpush1.msra.mxu0 0.0
    %1805 = vmatprep.subr.mxu0 0.0
    %1806 = vmatpush1.msra.mxu0 0.0
    %1807 = vmatprep.subr.mxu0 0.0
    %1808 = vmatpush1.msra.mxu0 0.0
    %1809 = vmatprep.subr.mxu0 0.0
    %1810 = vmatpush1.msra.mxu0 0.0
    %1811 = vmatprep.subr.mxu0 0.0
    %1812 = vmatpush1.msra.mxu0 0.0
    %1813 = vmatprep.subr.mxu0 0.0
    %1814 = vmatpush1.msra.mxu0 0.0
    %1815 = vmatprep.subr.mxu0 0.0
    %1816 = vmatpush1.msra.mxu0 0.0
    %1817 = vmatprep.subr.mxu0 0.0
    %1818 = vmatpush1.msra.mxu0 0.0
    %1819 = vmatprep.mubr.f32.mxu0 0.0
    %1820 = vmatmul.mubr.f32.gmra.mrb[0].mxu0 %v1750
    %v1821 = vpop.f32.mrb[0].mxu0
    %v1822 = vadd.f32 0.0, %v1821
    %v1823 = vpop.f32.mrb[0].mxu0
    %1824 = vmatprep.mubr.f32.mxu0 0.0
    %1825 = vmatmul.mubr.f32.gmra.mrb[0].mxu0 %v1753
    %v1826 = vpop.f32.mrb[0].mxu0
    %v1827 = vadd.f32 0.0, %v1826
    %v1828 = vpop.f32.mrb[0].mxu0
    %1829 = vdwg.mxu0
    %v1830 = vadd.f32 %v1547, %v1822
    %v1831 = vadd.f32 %v1548, %v1827
    %v1832 = vadd.f32 %v1165, %v1830
    %v1833 = vadd.f32 %v1166, %v1831
    %v1834 = vsel %vm147, %v1832, 0.0
    %1835 = vadd.xlane.f32.xlu0 %v1834
    %v1836 = vpop.xlane.xlu0 %1835
    %v1837 = vsel %vm147, %v1833, 0.0
    %1838 = vadd.xlane.f32.xlu0 %v1837
    %v1839 = vpop.xlane.xlu0 %1838
    %v1840 = vmul.f32 %v1836, %v154
    %v1841 = vmul.f32 %v1839, %v154
    %v1842 = vsub.f32 %v1832, %v1840
    %v1843 = vsub.f32 %v1833, %v1841
    %v1844 = vmul.f32 %v1842, %v1842
    %v1845 = vmul.f32 %v1843, %v1843
    %v1846 = vsel %vm147, %v1844, 0.0
    %1847 = vadd.xlane.f32.xlu0 %v1846
    %v1848 = vpop.xlane.xlu0 %1847
    %v1849 = vsel %vm147, %v1845, 0.0
    %1850 = vadd.xlane.f32.xlu0 %v1849
    %v1851 = vpop.xlane.xlu0 %1850
    %v1852 = vmul.f32 %v1848, %v154
    %v1853 = vmul.f32 %v1851, %v154
    %v1854 = vadd.f32 %v1852, 1e-12
    %v1855 = vadd.f32 %v1853, 1e-12
    %v1856 = vrsqrt.pop %v1854
    %v1857 = vrsqrt.pop %v1855
    %v1858 = vmul.f32 %v1842, %v1856
    %v1859 = vmul.f32 %v1843, %v1857
    %v1860 = vlaneseq
    %v1861 = vshrl.u32 %v1860, 7
    %v1862 = vsub.s32 2, %v1861
    %v1863 = vrot.slane %v1168, %v1862
    %v1864 = vmul.f32 %v1858, %v1863
    %v1865 = vmul.f32 %v1859, %v1863
    %v1866 = vlaneseq
    %v1867 = vshrl.u32 %v1866, 7
    %v1868 = vsub.s32 3, %v1867
    %v1869 = vrot.slane %v1168, %v1868
    %v1870 = vadd.f32 %v1864, %v1869
    %v1871 = vadd.f32 %v1865, %v1869
    %s1872 = scalar_lea.vmem %s4, 32
    %v1873 = vld [vmem:[%s1872] sm:$0xff]
    %v1874 = vld [vmem:[%s1872 + $0x8] sm:$0xff]
    %v1875 = vld [vmem:[%s1872 + $0x10] sm:$0xff]
    %v1876 = vld [vmem:[%s1872 + $0x18] sm:$0xff]
    %v1877 = vlaneseq
    %v1878 = vshrl.u32 %v1877, 7
    %v1879 = vsub.s32 4, %v1878
    %v1880 = vrot.slane %v1168, %v1879
    %v1882 = vsel %vm147, %v1870, 0
    %v1885 = vsel %vm147, %v1871, 0
    %1887 = vmatprep.subr.mxu0 0.0
    %1888 = vmatpush1.msra.mxu0 %v1873
    %1889 = vmatprep.subr.mxu0 0.0
    %1890 = vmatpush1.msra.mxu0 %v1874
    %1891 = vmatprep.subr.mxu0 0.0
    %1892 = vmatpush1.msra.mxu0 %v1875
    %1893 = vmatprep.subr.mxu0 0.0
    %1894 = vmatpush1.msra.mxu0 %v1876
    %1895 = vmatprep.subr.mxu0 0.0
    %1896 = vmatpush1.msra.mxu0 0.0
    %1897 = vmatprep.subr.mxu0 0.0
    %1898 = vmatpush1.msra.mxu0 0.0
    %1899 = vmatprep.subr.mxu0 0.0
    %1900 = vmatpush1.msra.mxu0 0.0
    %1901 = vmatprep.subr.mxu0 0.0
    %1902 = vmatpush1.msra.mxu0 0.0
    %1903 = vmatprep.subr.mxu0 0.0
    %1904 = vmatpush1.msra.mxu0 0.0
    %1905 = vmatprep.subr.mxu0 0.0
    %1906 = vmatpush1.msra.mxu0 0.0
    %1907 = vmatprep.subr.mxu0 0.0
    %1908 = vmatpush1.msra.mxu0 0.0
    %1909 = vmatprep.subr.mxu0 0.0
    %1910 = vmatpush1.msra.mxu0 0.0
    %1911 = vmatprep.subr.mxu0 0.0
    %1912 = vmatpush1.msra.mxu0 0.0
    %1913 = vmatprep.subr.mxu0 0.0
    %1914 = vmatpush1.msra.mxu0 0.0
    %1915 = vmatprep.subr.mxu0 0.0
    %1916 = vmatpush1.msra.mxu0 0.0
    %1917 = vmatprep.subr.mxu0 0.0
    %1918 = vmatpush1.msra.mxu0 0.0
    %1919 = vmatprep.subr.mxu0 0.0
    %1920 = vmatpush1.msra.mxu0 0.0
    %1921 = vmatprep.subr.mxu0 0.0
    %1922 = vmatpush1.msra.mxu0 0.0
    %1923 = vmatprep.subr.mxu0 0.0
    %1924 = vmatpush1.msra.mxu0 0.0
    %1925 = vmatprep.subr.mxu0 0.0
    %1926 = vmatpush1.msra.mxu0 0.0
    %1927 = vmatprep.subr.mxu0 0.0
    %1928 = vmatpush1.msra.mxu0 0.0
    %1929 = vmatprep.subr.mxu0 0.0
    %1930 = vmatpush1.msra.mxu0 0.0
    %1931 = vmatprep.subr.mxu0 0.0
    %1932 = vmatpush1.msra.mxu0 0.0
    %1933 = vmatprep.subr.mxu0 0.0
    %1934 = vmatpush1.msra.mxu0 0.0
    %1935 = vmatprep.subr.mxu0 0.0
    %1936 = vmatpush1.msra.mxu0 0.0
    %1937 = vmatprep.subr.mxu0 0.0
    %1938 = vmatpush1.msra.mxu0 0.0
    %1939 = vmatprep.subr.mxu0 0.0
    %1940 = vmatpush1.msra.mxu0 0.0
    %1941 = vmatprep.subr.mxu0 0.0
    %1942 = vmatpush1.msra.mxu0 0.0
    %1943 = vmatprep.subr.mxu0 0.0
    %1944 = vmatpush1.msra.mxu0 0.0
    %1945 = vmatprep.subr.mxu0 0.0
    %1946 = vmatpush1.msra.mxu0 0.0
    %1947 = vmatprep.subr.mxu0 0.0
    %1948 = vmatpush1.msra.mxu0 0.0
    %1949 = vmatprep.subr.mxu0 0.0
    %1950 = vmatpush1.msra.mxu0 0.0
    %1951 = vmatprep.mubr.f32.mxu0 0.0
    %1952 = vmatmul.mubr.f32.gmra.mrb[0].mxu0 %v1882
    %v1953 = vpop.f32.mrb[0].mxu0
    %v1954 = vadd.f32 %v1880, %v1953
    %v1955 = vpop.f32.mrb[0].mxu0
    %1956 = vmatprep.mubr.f32.mxu0 0.0
    %1957 = vmatmul.mubr.f32.gmra.mrb[0].mxu0 %v1885
    %v1958 = vpop.f32.mrb[0].mxu0
    %v1959 = vadd.f32 %v1880, %v1958
    %v1960 = vpop.f32.mrb[0].mxu0
    %1961 = vdwg.mxu0
    %v1962 = vmul.f32 %v1954, %v1954
    %v1963 = vmul.f32 %v1959, %v1959
    %v1964 = vmul.f32 %v1954, %v1962
    %v1965 = vmul.f32 %v1959, %v1963
    %v1966 = vmul.f32 %v1964, 0.044715
    %v1967 = vmul.f32 %v1965, 0.044715
    %v1968 = vadd.f32 %v1954, %v1966
    %v1969 = vadd.f32 %v1959, %v1967
    %v1970 = vmul.f32 %v1968, 0.7978846
    %v1971 = vmul.f32 %v1969, 0.7978846
    %v1972 = vtanh.pop %v1970
    %v1973 = vtanh.pop %v1971
    %v1974 = vadd.f32 %v1972, 1.0
    %v1975 = vadd.f32 %v1973, 1.0
    %v1976 = vmul.f32 %v1974, 0.5
    %v1977 = vmul.f32 %v1975, 0.5
    %v1978 = vmul.f32 %v1954, %v1976
    %v1979 = vmul.f32 %v1959, %v1977
    %s1980 = scalar_lea.vmem %s5, 128
    %v1981 = vld [vmem:[%s1980] sm:$0xff]
    %v1982 = vld [vmem:[%s1980 + $0x8] sm:$0xff]
    %v1983 = vld [vmem:[%s1980 + $0x10] sm:$0xff]
    %v1984 = vld [vmem:[%s1980 + $0x18] sm:$0xff]
    %v1985 = vld [vmem:[%s1980 + $0x20] sm:$0xff]
    %v1986 = vld [vmem:[%s1980 + $0x28] sm:$0xff]
    %v1987 = vld [vmem:[%s1980 + $0x30] sm:$0xff]
    %v1988 = vld [vmem:[%s1980 + $0x38] sm:$0xff]
    %v1989 = vld [vmem:[%s1980 + $0x40] sm:$0xff]
    %v1990 = vld [vmem:[%s1980 + $0x48] sm:$0xff]
    %v1991 = vld [vmem:[%s1980 + $0x50] sm:$0xff]
    %v1992 = vld [vmem:[%s1980 + $0x58] sm:$0xff]
    %v1993 = vld [vmem:[%s1980 + $0x60] sm:$0xff]
    %v1994 = vld [vmem:[%s1980 + $0x68] sm:$0xff]
    %v1995 = vld [vmem:[%s1980 + $0x70] sm:$0xff]
    %v1996 = vld [vmem:[%s1980 + $0x78] sm:$0xff]
    %v1997 = vlaneseq
    %v1998 = vshrl.u32 %v1997, 7
    %v1999 = vsub.s32 5, %v1998
    %v2000 = vrot.slane %v1168, %v1999
    %2001 = vmatprep.subr.mxu0 0.0
    %2002 = vmatpush1.msra.mxu0 %v1981
    %2003 = vmatprep.subr.mxu0 0.0
    %2004 = vmatpush1.msra.mxu0 %v1982
    %2005 = vmatprep.subr.mxu0 0.0
    %2006 = vmatpush1.msra.mxu0 %v1983
    %2007 = vmatprep.subr.mxu0 0.0
    %2008 = vmatpush1.msra.mxu0 %v1984
    %2009 = vmatprep.subr.mxu0 0.0
    %2010 = vmatpush1.msra.mxu0 %v1985
    %2011 = vmatprep.subr.mxu0 0.0
    %2012 = vmatpush1.msra.mxu0 %v1986
    %2013 = vmatprep.subr.mxu0 0.0
    %2014 = vmatpush1.msra.mxu0 %v1987
    %2015 = vmatprep.subr.mxu0 0.0
    %2016 = vmatpush1.msra.mxu0 %v1988
    %2017 = vmatprep.subr.mxu0 0.0
    %2018 = vmatpush1.msra.mxu0 %v1989
    %2019 = vmatprep.subr.mxu0 0.0
    %2020 = vmatpush1.msra.mxu0 %v1990
    %2021 = vmatprep.subr.mxu0 0.0
    %2022 = vmatpush1.msra.mxu0 %v1991
    %2023 = vmatprep.subr.mxu0 0.0
    %2024 = vmatpush1.msra.mxu0 %v1992
    %2025 = vmatprep.subr.mxu0 0.0
    %2026 = vmatpush1.msra.mxu0 %v1993
    %2027 = vmatprep.subr.mxu0 0.0
    %2028 = vmatpush1.msra.mxu0 %v1994
    %2029 = vmatprep.subr.mxu0 0.0
    %2030 = vmatpush1.msra.mxu0 %v1995
    %2031 = vmatprep.subr.mxu0 0.0
    %2032 = vmatpush1.msra.mxu0 %v1996
    %2033 = vmatprep.subr.mxu0 0.0
    %2034 = vmatpush1.msra.mxu0 0.0
    %2035 = vmatprep.subr.mxu0 0.0
    %2036 = vmatpush1.msra.mxu0 0.0
    %2037 = vmatprep.subr.mxu0 0.0
    %2038 = vmatpush1.msra.mxu0 0.0
    %2039 = vmatprep.subr.mxu0 0.0
    %2040 = vmatpush1.msra.mxu0 0.0
    %2041 = vmatprep.subr.mxu0 0.0
    %2042 = vmatpush1.msra.mxu0 0.0
    %2043 = vmatprep.subr.mxu0 0.0
    %2044 = vmatpush1.msra.mxu0 0.0
    %2045 = vmatprep.subr.mxu0 0.0
    %2046 = vmatpush1.msra.mxu0 0.0
    %2047 = vmatprep.subr.mxu0 0.0
    %2048 = vmatpush1.msra.mxu0 0.0
    %2049 = vmatprep.subr.mxu0 0.0
    %2050 = vmatpush1.msra.mxu0 0.0
    %2051 = vmatprep.subr.mxu0 0.0
    %2052 = vmatpush1.msra.mxu0 0.0
    %2053 = vmatprep.subr.mxu0 0.0
    %2054 = vmatpush1.msra.mxu0 0.0
    %2055 = vmatprep.subr.mxu0 0.0
    %2056 = vmatpush1.msra.mxu0 0.0
    %2057 = vmatprep.subr.mxu0 0.0
    %2058 = vmatpush1.msra.mxu0 0.0
    %2059 = vmatprep.subr.mxu0 0.0
    %2060 = vmatpush1.msra.mxu0 0.0
    %2061 = vmatprep.subr.mxu0 0.0
    %2062 = vmatpush1.msra.mxu0 0.0
    %2063 = vmatprep.subr.mxu0 0.0
    %2064 = vmatpush1.msra.mxu0 0.0
    %2065 = vmatprep.mubr.f32.mxu0 0.0
    %2066 = vmatmul.mubr.f32.gmra.mrb[0].mxu0 %v1978
    %v2067 = vpop.f32.mrb[0].mxu0
    %v2068 = vadd.f32 %v2000, %v2067
    %v2069 = vpop.f32.mrb[0].mxu0
    %2070 = vmatprep.mubr.f32.mxu0 0.0
    %2071 = vmatmul.mubr.f32.gmra.mrb[0].mxu0 %v1979
    %v2072 = vpop.f32.mrb[0].mxu0
    %v2073 = vadd.f32 %v2000, %v2072
    %v2074 = vpop.f32.mrb[0].mxu0
    %2075 = vdwg.mxu0
    %v2076 = vadd.f32 %v1870, %v2068
    %v2077 = vadd.f32 %v1871, %v2073
    %v2078 = vsel %vm147, %v2076, 0.0
    %2079 = vadd.xlane.f32.xlu0 %v2078
    %v2080 = vpop.xlane.xlu0 %2079
    %v2081 = vsel %vm147, %v2077, 0.0
    %2082 = vadd.xlane.f32.xlu0 %v2081
    %v2083 = vpop.xlane.xlu0 %2082
    %v2084 = vmul.f32 %v2080, %v154
    %v2085 = vmul.f32 %v2083, %v154
    %v2086 = vsub.f32 %v2076, %v2084
    %v2087 = vsub.f32 %v2077, %v2085
    %v2088 = vmul.f32 %v2086, %v2086
    %v2089 = vmul.f32 %v2087, %v2087
    %v2090 = vsel %vm147, %v2088, 0.0
    %2091 = vadd.xlane.f32.xlu0 %v2090
    %v2092 = vpop.xlane.xlu0 %2091
    %v2093 = vsel %vm147, %v2089, 0.0
    %2094 = vadd.xlane.f32.xlu0 %v2093
    %v2095 = vpop.xlane.xlu0 %2094
    %v2096 = vmul.f32 %v2092, %v154
    %v2097 = vmul.f32 %v2095, %v154
    %v2098 = vadd.f32 %v2096, 1e-12
    %v2099 = vadd.f32 %v2097, 1e-12
    %v2100 = vrsqrt.pop %v2098
    %v2101 = vrsqrt.pop %v2099
    %v2102 = vmul.f32 %v2086, %v2100
    %v2103 = vmul.f32 %v2087, %v2101
    %v2104 = vlaneseq
    %v2105 = vshrl.u32 %v2104, 7
    %v2106 = vsub.s32 6, %v2105
    %v2107 = vrot.slane %v1168, %v2106
    %v2108 = vmul.f32 %v2102, %v2107
    %v2109 = vmul.f32 %v2103, %v2107
    %v2110 = vlaneseq
    %v2111 = vshrl.u32 %v2110, 7
    %v2112 = vsub.s32 7, %v2111
    %v2113 = vrot.slane %v1168, %v2112
    %v2114 = vadd.f32 %v2108, %v2113
    %v2115 = vadd.f32 %v2109, %v2113
    %v2116 = vlaneseq
    %v2117 = vshrl.u32 %v2116, 7
    %v2118 = vsub.s32 2, %v2117
    %v2119 = vrot.slane %v55, %v2118
    %v2121 = vsel %vm147, %v2114, 0
    %v2124 = vsel %vm147, %v2115, 0
    %2126 = vmatprep.subr.mxu0 0.0
    %2127 = vmatpush1.msra.mxu0 %v50
    %2128 = vmatprep.subr.mxu0 0.0
    %2129 = vmatpush1.msra.mxu0 %v51
    %2130 = vmatprep.subr.mxu0 0.0
    %2131 = vmatpush1.msra.mxu0 %v52
    %2132 = vmatprep.subr.mxu0 0.0
    %2133 = vmatpush1.msra.mxu0 %v53
    %2134 = vmatprep.subr.mxu0 0.0
    %2135 = vmatpush1.msra.mxu0 0.0
    %2136 = vmatprep.subr.mxu0 0.0
    %2137 = vmatpush1.msra.mxu0 0.0
    %2138 = vmatprep.subr.mxu0 0.0
    %2139 = vmatpush1.msra.mxu0 0.0
    %2140 = vmatprep.subr.mxu0 0.0
    %2141 = vmatpush1.msra.mxu0 0.0
    %2142 = vmatprep.subr.mxu0 0.0
    %2143 = vmatpush1.msra.mxu0 0.0
    %2144 = vmatprep.subr.mxu0 0.0
    %2145 = vmatpush1.msra.mxu0 0.0
    %2146 = vmatprep.subr.mxu0 0.0
    %2147 = vmatpush1.msra.mxu0 0.0
    %2148 = vmatprep.subr.mxu0 0.0
    %2149 = vmatpush1.msra.mxu0 0.0
    %2150 = vmatprep.subr.mxu0 0.0
    %2151 = vmatpush1.msra.mxu0 0.0
    %2152 = vmatprep.subr.mxu0 0.0
    %2153 = vmatpush1.msra.mxu0 0.0
    %2154 = vmatprep.subr.mxu0 0.0
    %2155 = vmatpush1.msra.mxu0 0.0
    %2156 = vmatprep.subr.mxu0 0.0
    %2157 = vmatpush1.msra.mxu0 0.0
    %2158 = vmatprep.subr.mxu0 0.0
    %2159 = vmatpush1.msra.mxu0 0.0
    %2160 = vmatprep.subr.mxu0 0.0
    %2161 = vmatpush1.msra.mxu0 0.0
    %2162 = vmatprep.subr.mxu0 0.0
    %2163 = vmatpush1.msra.mxu0 0.0
    %2164 = vmatprep.subr.mxu0 0.0
    %2165 = vmatpush1.msra.mxu0 0.0
    %2166 = vmatprep.subr.mxu0 0.0
    %2167 = vmatpush1.msra.mxu0 0.0
    %2168 = vmatprep.subr.mxu0 0.0
    %2169 = vmatpush1.msra.mxu0 0.0
    %2170 = vmatprep.subr.mxu0 0.0
    %2171 = vmatpush1.msra.mxu0 0.0
    %2172 = vmatprep.subr.mxu0 0.0
    %2173 = vmatpush1.msra.mxu0 0.0
    %2174 = vmatprep.subr.mxu0 0.0
    %2175 = vmatpush1.msra.mxu0 0.0
    %2176 = vmatprep.subr.mxu0 0.0
    %2177 = vmatpush1.msra.mxu0 0.0
    %2178 = vmatprep.subr.mxu0 0.0
    %2179 = vmatpush1.msra.mxu0 0.0
    %2180 = vmatprep.subr.mxu0 0.0
    %2181 = vmatpush1.msra.mxu0 0.0
    %2182 = vmatprep.subr.mxu0 0.0
    %2183 = vmatpush1.msra.mxu0 0.0
    %2184 = vmatprep.subr.mxu0 0.0
    %2185 = vmatpush1.msra.mxu0 0.0
    %2186 = vmatprep.subr.mxu0 0.0
    %2187 = vmatpush1.msra.mxu0 0.0
    %2188 = vmatprep.subr.mxu0 0.0
    %2189 = vmatpush1.msra.mxu0 0.0
    %2190 = vmatprep.mubr.f32.mxu0 0.0
    %2191 = vmatmul.mubr.f32.gmra.mrb[0].mxu0 %v2121
    %v2192 = vpop.f32.mrb[0].mxu0
    %v2193 = vadd.f32 %v2119, %v2192
    %v2194 = vpop.f32.mrb[0].mxu0
    %2195 = vmatprep.mubr.f32.mxu0 0.0
    %2196 = vmatmul.mubr.f32.gmra.mrb[0].mxu0 %v2124
    %v2197 = vpop.f32.mrb[0].mxu0
    %v2198 = vadd.f32 %v2119, %v2197
    %v2199 = vpop.f32.mrb[0].mxu0
    %2200 = vdwg.mxu0
    %v2201 = vmul.f32 %v2193, %v2193
    %v2202 = vmul.f32 %v2198, %v2198
    %v2203 = vmul.f32 %v2193, %v2201
    %v2204 = vmul.f32 %v2198, %v2202
    %v2205 = vmul.f32 %v2203, 0.044715
    %v2206 = vmul.f32 %v2204, 0.044715
    %v2207 = vadd.f32 %v2193, %v2205
    %v2208 = vadd.f32 %v2198, %v2206
    %v2209 = vmul.f32 %v2207, 0.7978846
    %v2210 = vmul.f32 %v2208, 0.7978846
    %v2211 = vtanh.pop %v2209
    %v2212 = vtanh.pop %v2210
    %v2213 = vadd.f32 %v2211, 1.0
    %v2214 = vadd.f32 %v2212, 1.0
    %v2215 = vmul.f32 %v2213, 0.5
    %v2216 = vmul.f32 %v2214, 0.5
    %v2217 = vmul.f32 %v2193, %v2215
    %v2218 = vmul.f32 %v2198, %v2216
    %v2219 = vsel %vm147, %v2217, 0.0
    %2220 = vadd.xlane.f32.xlu0 %v2219
    %v2221 = vpop.xlane.xlu0 %2220
    %v2222 = vsel %vm147, %v2218, 0.0
    %2223 = vadd.xlane.f32.xlu0 %v2222
    %v2224 = vpop.xlane.xlu0 %2223
    %v2225 = vmul.f32 %v2221, %v154
    %v2226 = vmul.f32 %v2224, %v154
    %v2227 = vsub.f32 %v2217, %v2225
    %v2228 = vsub.f32 %v2218, %v2226
    %v2229 = vmul.f32 %v2227, %v2227
    %v2230 = vmul.f32 %v2228, %v2228
    %v2231 = vsel %vm147, %v2229, 0.0
    %2232 = vadd.xlane.f32.xlu0 %v2231
    %v2233 = vpop.xlane.xlu0 %2232
    %v2234 = vsel %vm147, %v2230, 0.0
    %2235 = vadd.xlane.f32.xlu0 %v2234
    %v2236 = vpop.xlane.xlu0 %2235
    %v2237 = vmul.f32 %v2233, %v154
    %v2238 = vmul.f32 %v2236, %v154
    %v2239 = vadd.f32 %v2237, 1e-12
    %v2240 = vadd.f32 %v2238, 1e-12
    %v2241 = vrsqrt.pop %v2239
    %v2242 = vrsqrt.pop %v2240
    %v2243 = vmul.f32 %v2227, %v2241
    %v2244 = vmul.f32 %v2228, %v2242
    %v2245 = vlaneseq
    %v2246 = vshrl.u32 %v2245, 7
    %v2247 = vsub.s32 3, %v2246
    %v2248 = vrot.slane %v55, %v2247
    %v2249 = vmul.f32 %v2243, %v2248
    %v2250 = vmul.f32 %v2244, %v2248
    %v2251 = vlaneseq
    %v2252 = vshrl.u32 %v2251, 7
    %v2253 = vsub.s32 4, %v2252
    %v2254 = vrot.slane %v55, %v2253
    %v2255 = vadd.f32 %v2249, %v2254
    %v2256 = vadd.f32 %v2250, %v2254
    %v2257 = vlaneseq
    %v2258 = vshrl.u32 %v2257, 7
    %v2259 = vsub.s32 5, %v2258
    %v2260 = vrot.slane %v55, %v2259
    %v2262 = vsel %vm147, %v2255, 0
    %v2265 = vsel %vm147, %v2256, 0
    %2267 = vmatprep.subr.mxu0 0.0
    %2268 = vmatpush1.msra.mxu0 %v45
    %2269 = vmatprep.subr.mxu0 0.0
    %2270 = vmatpush1.msra.mxu0 %v46
    %2271 = vmatprep.subr.mxu0 0.0
    %2272 = vmatpush1.msra.mxu0 %v47
    %2273 = vmatprep.subr.mxu0 0.0
    %2274 = vmatpush1.msra.mxu0 %v48
    %2275 = vmatprep.subr.mxu0 0.0
    %2276 = vmatpush1.msra.mxu0 0.0
    %2277 = vmatprep.subr.mxu0 0.0
    %2278 = vmatpush1.msra.mxu0 0.0
    %2279 = vmatprep.subr.mxu0 0.0
    %2280 = vmatpush1.msra.mxu0 0.0
    %2281 = vmatprep.subr.mxu0 0.0
    %2282 = vmatpush1.msra.mxu0 0.0
    %2283 = vmatprep.subr.mxu0 0.0
    %2284 = vmatpush1.msra.mxu0 0.0
    %2285 = vmatprep.subr.mxu0 0.0
    %2286 = vmatpush1.msra.mxu0 0.0
    %2287 = vmatprep.subr.mxu0 0.0
    %2288 = vmatpush1.msra.mxu0 0.0
    %2289 = vmatprep.subr.mxu0 0.0
    %2290 = vmatpush1.msra.mxu0 0.0
    %2291 = vmatprep.subr.mxu0 0.0
    %2292 = vmatpush1.msra.mxu0 0.0
    %2293 = vmatprep.subr.mxu0 0.0
    %2294 = vmatpush1.msra.mxu0 0.0
    %2295 = vmatprep.subr.mxu0 0.0
    %2296 = vmatpush1.msra.mxu0 0.0
    %2297 = vmatprep.subr.mxu0 0.0
    %2298 = vmatpush1.msra.mxu0 0.0
    %2299 = vmatprep.subr.mxu0 0.0
    %2300 = vmatpush1.msra.mxu0 0.0
    %2301 = vmatprep.subr.mxu0 0.0
    %2302 = vmatpush1.msra.mxu0 0.0
    %2303 = vmatprep.subr.mxu0 0.0
    %2304 = vmatpush1.msra.mxu0 0.0
    %2305 = vmatprep.subr.mxu0 0.0
    %2306 = vmatpush1.msra.mxu0 0.0
    %2307 = vmatprep.subr.mxu0 0.0
    %2308 = vmatpush1.msra.mxu0 0.0
    %2309 = vmatprep.subr.mxu0 0.0
    %2310 = vmatpush1.msra.mxu0 0.0
    %2311 = vmatprep.subr.mxu0 0.0
    %2312 = vmatpush1.msra.mxu0 0.0
    %2313 = vmatprep.subr.mxu0 0.0
    %2314 = vmatpush1.msra.mxu0 0.0
    %2315 = vmatprep.subr.mxu0 0.0
    %2316 = vmatpush1.msra.mxu0 0.0
    %2317 = vmatprep.subr.mxu0 0.0
    %2318 = vmatpush1.msra.mxu0 0.0
    %2319 = vmatprep.subr.mxu0 0.0
    %2320 = vmatpush1.msra.mxu0 0.0
    %2321 = vmatprep.subr.mxu0 0.0
    %2322 = vmatpush1.msra.mxu0 0.0
    %2323 = vmatprep.subr.mxu0 0.0
    %2324 = vmatpush1.msra.mxu0 0.0
    %2325 = vmatprep.subr.mxu0 0.0
    %2326 = vmatpush1.msra.mxu0 0.0
    %2327 = vmatprep.subr.mxu0 0.0
    %2328 = vmatpush1.msra.mxu0 0.0
    %2329 = vmatprep.subr.mxu0 0.0
    %2330 = vmatpush1.msra.mxu0 0.0
    %2331 = vmatprep.mubr.f32.mxu0 0.0
    %2332 = vmatmul.mubr.f32.gmra.mrb[0].mxu0 %v2262
    %v2333 = vpop.f32.mrb[0].mxu0
    %v2334 = vadd.f32 %v2260, %v2333
    %v2335 = vpop.f32.mrb[0].mxu0
    %2336 = vmatprep.mubr.f32.mxu0 0.0
    %2337 = vmatmul.mubr.f32.gmra.mrb[0].mxu0 %v2265
    %v2338 = vpop.f32.mrb[0].mxu0
    %v2339 = vadd.f32 %v2260, %v2338
    %v2340 = vpop.f32.mrb[0].mxu0
    %2341 = vdwg.mxu0
    %2342 = vst [vmem:[#allocation2] sm:$0xff] %v2334
    %2343 = vst [vmem:[#allocation2 + $0x8] sm:$0xff] %v2339
    // Predicated region
    $region30: #{geneformer_adapter_forward.1} parent=1 // pred_check
      _
    $region31: #{geneformer_adapter_forward.1} parent=1 // pred_check_branch
      %2345 = sbr.rel (0) target = $region33
    $region32: #{geneformer_adapter_forward.1} parent=1 // pred_region
      %s2347 = ssub.s32 256, 256
      %2348 = vsyncadd [#allocation3], %s2347
      %s2349 = sshll.u32 [#allocation2], 4
      %s2350 = int_to_ptr.vmem [resolvable:$true] %s2349
      %2355 = dma.vmem_to_hbm [thread:$0]  %s2350, 256, %s7, [#allocation3], 128, 128, 8
    $region33: #{geneformer_adapter_forward.1} parent=1 // pred_fallthru
      _
    // Predicated region
    $region34: #{geneformer_adapter_forward.1} parent=1 // pred_check
      _
    $region35: #{geneformer_adapter_forward.1} parent=1 // pred_check_branch
      %2357 = sbr.rel (0) target = $region37
    $region36: #{geneformer_adapter_forward.1} parent=1 // pred_region
      %2358 = dma.done [#allocation3], 256
    $region37: #{geneformer_adapter_forward.1} parent=1 // pred_fallthru
      _
    %2359 = vsyncpa [#allocation3], 1

</llo_original>
